<compile_context>
chip_gen: v7x
topology: tpu7x:2x2x1
jax: 0.10.0
libtpu: 0.0.40
codegen_flags: <defaults>
</compile_context>

<pallas_src>
import functools

import jax
import jax.numpy as jnp
from jax.experimental import pallas as pl
from jax.experimental.pallas import tpu as pltpu

FEAT_DIM = 2048          # ResNet50 feature size
EMB_DIM = 1023           # (2048 - 3) // 2 + 1  -> Conv1d(1,1,3,stride=2)
EMB_PAD = 1024           # lane-dense internal embedding width
ATT_HIDDEN = 128         # SoftAttention hidden size

_VMEM = pl.BlockSpec(memory_space=pltpu.MemorySpace.VMEM)
_SMEM = pl.BlockSpec(memory_space=pltpu.MemorySpace.SMEM)


def _vmem_limit_bytes():
    """Chip-aware scoped-VMEM request: ~75% of physical, capped at 100 MiB.

    v7x: 64 MiB physical -> 48 MiB; v5e/v6e: 128 MiB -> 96 MiB.
    """
    cap = 64 * 1024 * 1024            # conservative default (v7x physical)
    try:
        info = pltpu.get_tpu_info()
        cap = int(getattr(info, "vmem_capacity_bytes", cap))
    except Exception:
        pass
    return min((cap * 3) // 4, 100 * 1024 * 1024)


def _pick_row_tile(bn, stream_row_bytes, budget_bytes):
    """Largest row tile (multiple of 8, divides bn) fitting `budget_bytes`.

    Per-grid-step footprint model:
      image blocks : tile * stream_row_bytes * 2 streams * 2 (double-buffered)
      live temps   : ~8 x (tile, 1024) f32 equivalents (per-tap accumulators,
                     both stream embeddings, bf16 stacked operand, proj).
    Falls back to the minimum legal tile (8), never the whole array.
    """
    for t in (512, 256, 128, 64, 32, 16, 8):
        if bn % t != 0:
            continue
        est = t * stream_row_bytes * 2 * 2 + 8 * t * EMB_PAD * 4
        if est <= budget_bytes:
            return t
    return 8


# --------------------------------------------------------------------------
# Kernel A: backbone stand-in + Conv1d taps + SoftAttention + LSTM layer-0
#           input projection, fused; tiled & parallel over BN rows.
# --------------------------------------------------------------------------
def feat_att_proj_kernel(scal_ref, m_ref, h_ref,
                         mwa_ref, mwb_ref, mwc_ref, mba_ref, mbb_ref, mbc_ref,
                         hwa_ref, hwb_ref, hwc_ref, hba_ref, hbb_ref, hbc_ref,
                         wfused_ref, ab1_ref, aw2_ref, b0_ref, o_ref):
    # scal (SMEM f32[9]): [m_cw0,m_cw1,m_cw2,m_cb, h_cw0,h_cw1,h_cw2,h_cb, att_b2]
    # m_ref/h_ref: (T, C*HW) lane-dense image rows
    # *w{a,b,c}: (C, 1024)   *b{a,b,c}: (1, 1024)   (conv taps folded)
    # wfused: (1024, 128+4H) bf16 = [att_w1 | W_ih layer-0], zero pad row 1023
    # ab1: (1, 128)  aw2: (1, 128)  b0: (1, 4H)   o_ref: (T, 4H)
    T = m_ref.shape[0]
    C = mwa_ref.shape[0]
    HW = m_ref.shape[1] // C
    AH = ab1_ref.shape[1]

    def stream_embed(x_ref, wa, wb, wc, ba, bb, bc, cw0, cw1, cw2, cb):
        # Per-channel GAP from static lane slices of the (T, C*HW) block.
        gap = [jnp.mean(x_ref[:, c * HW:(c + 1) * HW], axis=-1, keepdims=True)
               for c in range(C)]                                   # C x (T,1)
        # Conv taps accumulated into one running embedding (few live temps).
        emb = None
        for w_ref, b_ref, cw in ((wa, ba, cw0), (wb, bb, cw1), (wc, bc, cw2)):
            acc = None
            for c in range(C):
                term = gap[c] * w_ref[c:c + 1, :]                   # (T, 1024)
                acc = term if acc is None else acc + term
            feat = jnp.maximum(acc + b_ref[...], 0.0)   # backbone proj + ReLU
            emb = cw * feat if emb is None else emb + cw * feat
        # Conv1d(1,1,3,stride=2) bias + ReLU.  Pad lane 1023 may end up as
        # relu(cb) != 0 -- harmless: both halves of wfused have a zero row
        # there, so no explicit mask is needed.
        return jnp.maximum(emb + cb, 0.0)

    m_emb = stream_embed(m_ref, mwa_ref, mwb_ref, mwc_ref,
                         mba_ref, mbb_ref, mbc_ref,
                         scal_ref[0], scal_ref[1], scal_ref[2], scal_ref[3])
    h_emb = stream_embed(h_ref, hwa_ref, hwb_ref, hwc_ref,
                         hba_ref, hbb_ref, hbc_ref,
                         scal_ref[4], scal_ref[5], scal_ref[6], scal_ref[7])

    # One full-width bf16 MXU pass for [attention hidden | layer-0 projection]
    # over both streams stacked; blending the projections afterwards is
    # equivalent to projecting the blended embedding (linear).
    stacked = jnp.concatenate([m_emb, h_emb], axis=0).astype(jnp.bfloat16)
    proj = jnp.dot(stacked, wfused_ref[...],
                   preferred_element_type=jnp.float32)          # (2T, 128+4H)

    hid = jnp.maximum(proj[:, :AH] + ab1_ref[...], 0.0)         # (2T, 128)
    sc = jnp.sum(hid * aw2_ref[...], axis=-1, keepdims=True) + scal_ref[8]
    sm, sh = sc[:T], sc[T:]
    mx = jnp.maximum(sm, sh)
    em = jnp.exp(sm - mx)
    eh = jnp.exp(sh - mx)
    den = em + eh                 # exact 2-way softmax (denominator in [1, 2])
    wm = em / den
    wh = eh / den

    xm = proj[:T, AH:]
    xh = proj[T:, AH:]
    o_ref[...] = wm * xm + wh * xh + b0_ref[...]


def feat_att_call(scal, m2, h2, tap_w, wfused, ab1, aw2, b0, h4):
    bn, chw = m2.shape
    limit = _vmem_limit_bytes()
    tile = _pick_row_tile(bn, chw * 4, limit - (4 << 20))   # leave weight room
    grid = (bn // tile,)

    img_spec = pl.BlockSpec((tile, chw), lambda i: (i, 0))
    in_specs = [_SMEM, img_spec, img_spec] + [_VMEM] * (len(tap_w) + 4)

    return pl.pallas_call(
        feat_att_proj_kernel,
        out_shape=jax.ShapeDtypeStruct((bn, h4), jnp.float32),
        grid=grid,
        in_specs=in_specs,
        out_specs=pl.BlockSpec((tile, h4), lambda i: (i, 0)),
        compiler_params=pltpu.CompilerParams(
            dimension_semantics=("parallel",),
            vmem_limit_bytes=limit),
    )(scal, m2, h2, *tap_w, wfused, ab1, aw2, b0)


# --------------------------------------------------------------------------
# Kernel B: multi-layer LSTM recurrence (state in VMEM scratch, unrolled time
#           loop) fused with the TimeDistributed fc head (one matmul).
# --------------------------------------------------------------------------
def lstm_fc_kernel(fuse_gates, *refs):
    if fuse_gates:
        (x0_ref, wih_ref, whh_ref, b_ref, fcw_ref, fcb_ref,
         o_ref, h_st, c_st, hseq) = refs
        n_steps = x0_ref.shape[0]
    else:
        (xi_ref, xf_ref, xg_ref, xo_ref, wih_ref, whh_ref, b_ref,
         fcw_ref, fcb_ref, o_ref, h_st, c_st, hseq) = refs
        n_steps = xi_ref.shape[0]
    L, TB, H = h_st.shape
    O = o_ref.shape[2]

    h_st[...] = jnp.zeros(h_st.shape, h_st.dtype)
    c_st[...] = jnp.zeros(c_st.shape, c_st.dtype)

    def sigmoid(z):                       # stable, uses the EUP tanh
        return 0.5 * (jnp.tanh(0.5 * z) + 1.0)

    def step(t, carry):
        layer_in = None
        for l in range(L):
            h_prev = h_st[l]
            c_prev = c_st[l]
            if fuse_gates:
                # Fused (H, 4H) bf16 weights: one matmul per operand, gates
                # sliced on 128-aligned lanes (only when hidden_dim % 128 == 0).
                rec = jnp.dot(h_prev.astype(whh_ref.dtype), whh_ref[l],
                              preferred_element_type=jnp.float32)
                if l == 0:
                    pre = x0_ref[t] + rec
                else:
                    pre = (jnp.dot(layer_in.astype(wih_ref.dtype), wih_ref[l],
                                   preferred_element_type=jnp.float32)
                           + rec + b_ref[l])
                i_g = sigmoid(pre[:, 0 * H:1 * H])
                f_g = sigmoid(pre[:, 1 * H:2 * H])
                g_g = jnp.tanh(pre[:, 2 * H:3 * H])
                o_g = sigmoid(pre[:, 3 * H:4 * H])
            else:
                if l == 0:
                    gates = [xk[t] + jnp.dot(h_prev, whh_ref[l, k],
                                             preferred_element_type=jnp.float32)
                             for k, xk in enumerate(
                                 (xi_ref, xf_ref, xg_ref, xo_ref))]
                else:
                    gates = [jnp.dot(layer_in, wih_ref[l, k],
                                     preferred_element_type=jnp.float32)
                             + jnp.dot(h_prev, whh_ref[l, k],
                                       preferred_element_type=jnp.float32)
                             + b_ref[l, k]
                             for k in range(4)]
                i_g = sigmoid(gates[0])    # PyTorch gate order [i | f | g | o]
                f_g = sigmoid(gates[1])
                g_g = jnp.tanh(gates[2])
                o_g = sigmoid(gates[3])
            c_new = f_g * c_prev + i_g * g_g
            h_new = o_g * jnp.tanh(c_new)
            h_st[l] = h_new
            c_st[l] = c_new
            layer_in = h_new
        # Flat (N*TB, H) hidden-sequence slab: no post-loop concat/relayouts.
        hseq[pl.ds(t * TB, TB), :] = layer_in
        return carry

    jax.lax.fori_loop(0, n_steps, step, 0, unroll=True)

    # TimeDistributed fc head hoisted out of the recurrence: one matmul over
    # the flat hidden-state slab.
    out2d = (jnp.dot(hseq[...], fcw_ref[...],
                     preferred_element_type=jnp.float32) + fcb_ref[...])
    for t in range(n_steps):              # tiny static (TB, O) stores
        o_ref[t] = out2d[t * TB:(t + 1) * TB, :]


def lstm_fc_call(x_list, wih_all, whh_all, b_all, fc_w, fc_b,
                 n_layers, hidden_dim, output_size, fuse_gates):
    n, b_total, xdim = x_list[0].shape
    # Batch sharding across TensorCores (2 TC on v7x); only enabled when the
    # per-core slice keeps the sublane dim a multiple of 8 so the BlockSpec
    # (8,128) rule holds.  nb=1 otherwise / on small batches.
    nb = 2 if (b_total % 16 == 0) else 1
    tb = b_total // nb

    x_spec = pl.BlockSpec((n, tb, xdim), lambda i: (0, i, 0))
    out_spec = pl.BlockSpec((n, tb, output_size), lambda i: (0, i, 0))
    kernel = functools.partial(lstm_fc_kernel, fuse_gates)

    return pl.pallas_call(
        kernel,
        out_shape=jax.ShapeDtypeStruct((n, b_total, output_size), jnp.float32),
        grid=(nb,),
        in_specs=[x_spec] * len(x_list) + [_VMEM] * 5,
        out_specs=out_spec,
        scratch_shapes=[pltpu.VMEM((n_layers, tb, hidden_dim), jnp.float32),
                        pltpu.VMEM((n_layers, tb, hidden_dim), jnp.float32),
                        pltpu.VMEM((n * tb, hidden_dim), jnp.float32)],
        compiler_params=pltpu.CompilerParams(
            dimension_semantics=("parallel",)),
    )(*x_list, wih_all, whh_all, b_all, fc_w, fc_b)


# --------------------------------------------------------------------------
# Parameters (deterministic synthetic init — shapes from the module __init__)
# --------------------------------------------------------------------------
def init_params(key, in_channels, hidden_dim, n_layers, output_size):
    ks = iter(jax.random.split(key, 32))

    def nrm(shape, scale):
        return jax.random.normal(next(ks), shape, jnp.float32) * scale

    p = {}
    # backbone stand-in (see TODO at top of file)
    p["mov_proj_w"] = nrm((in_channels, FEAT_DIM), 0.2)
    p["mov_proj_b"] = nrm((1, FEAT_DIM), 0.05)
    p["hand_proj_w"] = nrm((in_channels, FEAT_DIM), 0.2)
    p["hand_proj_b"] = nrm((1, FEAT_DIM), 0.05)
    # nn.Conv1d(1, 1, 3, stride=2) for each stream
    p["mov_conv_w"] = nrm((3,), 0.5)
    p["mov_conv_b"] = nrm((1,), 0.1)
    p["hand_conv_w"] = nrm((3,), 0.5)
    p["hand_conv_b"] = nrm((1,), 0.1)
    # SoftAttention(1023, 128): Linear(1023,128) -> ReLU -> Linear(128,1)
    p["att_w1"] = nrm((EMB_DIM, ATT_HIDDEN), 1.0 / (EMB_DIM ** 0.5))
    p["att_b1"] = nrm((1, ATT_HIDDEN), 0.02)
    p["att_w2"] = nrm((ATT_HIDDEN, 1), 1.0 / (ATT_HIDDEN ** 0.5))
    p["att_b2"] = nrm((1,), 0.02)
    # LSTM(input=1023, hidden=hidden_dim, num_layers=n_layers), gates [i|f|g|o]
    lstm = []
    in_dim = EMB_DIM
    for _ in range(n_layers):
        wih = nrm((in_dim, 4 * hidden_dim), 1.0 / (in_dim ** 0.5))
        whh = nrm((hidden_dim, 4 * hidden_dim), 1.0 / (hidden_dim ** 0.5))
        bias = nrm((1, 4 * hidden_dim), 0.02)   # b_ih + b_hh folded
        lstm.append((wih, whh, bias))
        in_dim = hidden_dim
    p["lstm"] = lstm
    # Linear(hidden_dim, output_size)
    p["fc_w"] = nrm((hidden_dim, output_size), 1.0 / (hidden_dim ** 0.5))
    p["fc_b"] = nrm((1, output_size), 0.02)
    return p


# --------------------------------------------------------------------------
# Full forward (wrapper glue: weight-only slicing / padding, tiny transposes)
# --------------------------------------------------------------------------
def iter_star_rgb_forward(m, h, params, hidden_dim, n_layers, output_size):
    B, N, C, H, W = m.shape
    BN = B * N
    H4 = 4 * hidden_dim

    # Lane-dense image layout (BN, C*HW); pad BN to a multiple of 8.
    m2 = m.reshape(BN, C * H * W).astype(jnp.float32)
    h2 = h.reshape(BN, C * H * W).astype(jnp.float32)
    bn_pad = ((BN + 7) // 8) * 8
    if bn_pad != BN:
        m2 = jnp.pad(m2, ((0, bn_pad - BN), (0, 0)))
        h2 = jnp.pad(h2, ((0, bn_pad - BN), (0, 0)))

    # Conv1d(1,1,3,stride=2) taps folded into the projection weights:
    #   tap_a -> feat[2j], tap_b -> feat[2j+1], tap_c -> feat[2j+2], j=0..1022,
    # each zero-padded from 1023 to 1024 columns (lane-dense).
    def tap_slices(w, b):
        def pad(x):
            return jnp.pad(x, ((0, 0), (0, 1)))
        wa = pad(w[:, 0:2 * EMB_DIM:2]);     ba = pad(b[:, 0:2 * EMB_DIM:2])
        wb = pad(w[:, 1:2 * EMB_DIM:2]);     bb = pad(b[:, 1:2 * EMB_DIM:2])
        wc = pad(w[:, 2:2 * EMB_DIM + 1:2]); bc = pad(b[:, 2:2 * EMB_DIM + 1:2])
        return [wa, wb, wc, ba, bb, bc]

    tap_w = (tap_slices(params["mov_proj_w"], params["mov_proj_b"])
             + tap_slices(params["hand_proj_w"], params["hand_proj_b"]))

    # Fused [attention-hidden | layer-0 LSTM input projection] weight (bf16
    # MXU operand; accumulation stays f32).  Row 1023 is the zero pad row.
    wih0, _, b0 = params["lstm"][0]
    wfused = jnp.concatenate(
        [jnp.pad(params["att_w1"], ((0, 1), (0, 0))),
         jnp.pad(wih0, ((0, 1), (0, 0)))], axis=1).astype(jnp.bfloat16)
    ab1 = params["att_b1"]                                   # (1, 128)
    aw2 = params["att_w2"].reshape(1, -1)                    # (1, 128)

    scal = jnp.concatenate([params["mov_conv_w"], params["mov_conv_b"],
                            params["hand_conv_w"], params["hand_conv_b"],
                            params["att_b2"]]).astype(jnp.float32)   # (9,)

    # Kernel A: (BN, 4H) layer-0 pre-projected gates.
    xproj = feat_att_call(scal, m2, h2, tap_w, wfused, ab1, aw2, b0, H4)
    xproj = xproj[:BN]

    fuse_gates = (hidden_dim % 128 == 0)
    if fuse_gates:
        # Fused (H, 4H) weights (bf16), 128-aligned gate slices in-kernel.
        x_list = [jnp.transpose(xproj.reshape(B, N, H4), (1, 0, 2))]  # (N,B,4H)
        wih_list = [jnp.zeros((hidden_dim, H4), jnp.float32)]         # layer-0 unused
        b_list = [jnp.zeros((1, H4), jnp.float32)]                    # layer-0 folded
        for l in range(1, n_layers):
            wih_list.append(params["lstm"][l][0])
            b_list.append(params["lstm"][l][2])
        wih_all = jnp.stack(wih_list).astype(jnp.bfloat16)            # (L, H, 4H)
        whh_all = jnp.stack([params["lstm"][l][1] for l in range(n_layers)]
                            ).astype(jnp.bfloat16)                    # (L, H, 4H)
        b_all = jnp.stack(b_list)                                     # (L, 1, 4H)
    else:
        # Per-gate (H, H) weights for small hidden dims (< 128 lanes).
        xp = jnp.transpose(xproj.reshape(B, N, 4, hidden_dim), (2, 1, 0, 3))
        x_list = [xp[0], xp[1], xp[2], xp[3]]                          # (N, B, H)

        def split_gates(w):                                  # (E, 4H) -> (4, E, H)
            return jnp.transpose(w.reshape(w.shape[0], 4, hidden_dim), (1, 0, 2))

        whh_all = jnp.stack([split_gates(params["lstm"][l][1])
                             for l in range(n_layers)])                # (L,4,H,H)
        wih_list = [jnp.zeros((4, hidden_dim, hidden_dim), jnp.float32)]
        b_list = [jnp.zeros((4, 1, hidden_dim), jnp.float32)]
        for l in range(1, n_layers):
            wih_list.append(split_gates(params["lstm"][l][0]))
            b_list.append(jnp.transpose(
                params["lstm"][l][2].reshape(1, 4, hidden_dim), (1, 0, 2)))
        wih_all = jnp.stack(wih_list)
        b_all = jnp.stack(b_list)

    out3 = lstm_fc_call(x_list, wih_all, whh_all, b_all,
                        params["fc_w"], params["fc_b"],
                        n_layers, hidden_dim, output_size, fuse_gates)

    # (N, B, O) time-major -> (B*N, O) batch-major, matching PyTorch's view.
    return jnp.transpose(out3, (1, 0, 2)).reshape(BN, output_size)


# --------------------------------------------------------------------------
if __name__ == "__main__":
    B, N, C, H, W = 2, 4, 3, 16, 16
    hidden_dim, n_layers, output_size = 32, 2, 2

    key = jax.random.PRNGKey(0)
    k_m, k_h, k_p = jax.random.split(key, 3)
    m = jax.random.normal(k_m, (B, N, C, H, W), jnp.float32)
    h = jax.random.normal(k_h, (B, N, C, H, W), jnp.float32)
    params = init_params(k_p, C, hidden_dim, n_layers, output_size)

    out = iter_star_rgb_forward(m, h, params, hidden_dim, n_layers, output_size)
    out = jax.block_until_ready(out)
    assert out.shape == (B * N, output_size)
    assert bool(jnp.all(jnp.isfinite(out)))
    print("KERNEL_OK")
</pallas_src>

<mosaic_0001>
module attributes {stable_mosaic.version = 11 : i64} {
  func.func @feat_att_proj_kernel(%arg0: i32, %arg1: memref<9xf32, #tpu.memory_space<smem>>, %arg2: memref<8x768xf32, #tpu.memory_space<vmem>>, %arg3: memref<8x768xf32, #tpu.memory_space<vmem>>, %arg4: memref<3x1024xf32, #tpu.memory_space<vmem>>, %arg5: memref<3x1024xf32, #tpu.memory_space<vmem>>, %arg6: memref<3x1024xf32, #tpu.memory_space<vmem>>, %arg7: memref<1x1024xf32, #tpu.memory_space<vmem>>, %arg8: memref<1x1024xf32, #tpu.memory_space<vmem>>, %arg9: memref<1x1024xf32, #tpu.memory_space<vmem>>, %arg10: memref<3x1024xf32, #tpu.memory_space<vmem>>, %arg11: memref<3x1024xf32, #tpu.memory_space<vmem>>, %arg12: memref<3x1024xf32, #tpu.memory_space<vmem>>, %arg13: memref<1x1024xf32, #tpu.memory_space<vmem>>, %arg14: memref<1x1024xf32, #tpu.memory_space<vmem>>, %arg15: memref<1x1024xf32, #tpu.memory_space<vmem>>, %arg16: memref<1024x256xbf16, #tpu.memory_space<vmem>>, %arg17: memref<1x128xf32, #tpu.memory_space<vmem>>, %arg18: memref<1x128xf32, #tpu.memory_space<vmem>>, %arg19: memref<1x128xf32, #tpu.memory_space<vmem>>, %arg20: memref<8x128xf32, #tpu.memory_space<vmem>>) attributes {dimension_semantics = [#tpu.dimension_semantics<parallel>], iteration_bounds = array<i64: 1>, scalar_prefetch = 0 : i64, scratch_operands = 0 : i64, tpu.core_type = #tpu.core_type<tc>, window_params = [{transform_indices = @transform_0, window_bounds = array<i64: 9>}, {transform_indices = @transform_1, window_bounds = array<i64: 8, 768>}, {transform_indices = @transform_2, window_bounds = array<i64: 8, 768>}, {pipeline_mode = #tpu.pipeline_mode<synchronous>, transform_indices = @transform_3, window_bounds = array<i64: 3, 1024>}, {pipeline_mode = #tpu.pipeline_mode<synchronous>, transform_indices = @transform_4, window_bounds = array<i64: 3, 1024>}, {pipeline_mode = #tpu.pipeline_mode<synchronous>, transform_indices = @transform_5, window_bounds = array<i64: 3, 1024>}, {pipeline_mode = #tpu.pipeline_mode<synchronous>, transform_indices = @transform_6, window_bounds = array<i64: 1, 1024>}, {pipeline_mode = #tpu.pipeline_mode<synchronous>, transform_indices = @transform_7, window_bounds = array<i64: 1, 1024>}, {pipeline_mode = #tpu.pipeline_mode<synchronous>, transform_indices = @transform_8, window_bounds = array<i64: 1, 1024>}, {pipeline_mode = #tpu.pipeline_mode<synchronous>, transform_indices = @transform_9, window_bounds = array<i64: 3, 1024>}, {pipeline_mode = #tpu.pipeline_mode<synchronous>, transform_indices = @transform_10, window_bounds = array<i64: 3, 1024>}, {pipeline_mode = #tpu.pipeline_mode<synchronous>, transform_indices = @transform_11, window_bounds = array<i64: 3, 1024>}, {pipeline_mode = #tpu.pipeline_mode<synchronous>, transform_indices = @transform_12, window_bounds = array<i64: 1, 1024>}, {pipeline_mode = #tpu.pipeline_mode<synchronous>, transform_indices = @transform_13, window_bounds = array<i64: 1, 1024>}, {pipeline_mode = #tpu.pipeline_mode<synchronous>, transform_indices = @transform_14, window_bounds = array<i64: 1, 1024>}, {pipeline_mode = #tpu.pipeline_mode<synchronous>, transform_indices = @transform_15, window_bounds = array<i64: 1024, 256>}, {pipeline_mode = #tpu.pipeline_mode<synchronous>, transform_indices = @transform_16, window_bounds = array<i64: 1, 128>}, {pipeline_mode = #tpu.pipeline_mode<synchronous>, transform_indices = @transform_17, window_bounds = array<i64: 1, 128>}, {pipeline_mode = #tpu.pipeline_mode<synchronous>, transform_indices = @transform_18, window_bounds = array<i64: 1, 128>}, {transform_indices = @transform_19, window_bounds = array<i64: 8, 128>}]} {
    %c0 = arith.constant 0 : index
    %0 = memref.load %arg1[%c0] : memref<9xf32, #tpu.memory_space<smem>>
    %c1 = arith.constant 1 : index
    %1 = memref.load %arg1[%c1] : memref<9xf32, #tpu.memory_space<smem>>
    %c2 = arith.constant 2 : index
    %2 = memref.load %arg1[%c2] : memref<9xf32, #tpu.memory_space<smem>>
    %c3 = arith.constant 3 : index
    %3 = memref.load %arg1[%c3] : memref<9xf32, #tpu.memory_space<smem>>
    %c0_0 = arith.constant 0 : index
    %c0_1 = arith.constant 0 : index
    %4 = vector.load %arg2[%c0_0, %c0_1] : memref<8x768xf32, #tpu.memory_space<vmem>>, vector<8x256xf32>
    %cst = arith.constant dense<0.000000e+00> : vector<8xf32>
    %5 = vector.multi_reduction <add>, %4, %cst [1] : vector<8x256xf32> to vector<8xf32>
    %6 = vector.shape_cast %5 : vector<8xf32> to vector<8x1xf32>
    %cst_2 = arith.constant 2.560000e+02 : f32
    %7 = vector.broadcast %cst_2 : f32 to vector<8x1xf32>
    %8 = arith.divf %6, %7 : vector<8x1xf32>
    %c0_3 = arith.constant 0 : index
    %c256 = arith.constant 256 : index
    %9 = vector.load %arg2[%c0_3, %c256] : memref<8x768xf32, #tpu.memory_space<vmem>>, vector<8x256xf32>
    %cst_4 = arith.constant dense<0.000000e+00> : vector<8xf32>
    %10 = vector.multi_reduction <add>, %9, %cst_4 [1] : vector<8x256xf32> to vector<8xf32>
    %11 = vector.shape_cast %10 : vector<8xf32> to vector<8x1xf32>
    %cst_5 = arith.constant 2.560000e+02 : f32
    %12 = vector.broadcast %cst_5 : f32 to vector<8x1xf32>
    %13 = arith.divf %11, %12 : vector<8x1xf32>
    %c0_6 = arith.constant 0 : index
    %c512 = arith.constant 512 : index
    %14 = vector.load %arg2[%c0_6, %c512] : memref<8x768xf32, #tpu.memory_space<vmem>>, vector<8x256xf32>
    %cst_7 = arith.constant dense<0.000000e+00> : vector<8xf32>
    %15 = vector.multi_reduction <add>, %14, %cst_7 [1] : vector<8x256xf32> to vector<8xf32>
    %16 = vector.shape_cast %15 : vector<8xf32> to vector<8x1xf32>
    %cst_8 = arith.constant 2.560000e+02 : f32
    %17 = vector.broadcast %cst_8 : f32 to vector<8x1xf32>
    %18 = arith.divf %16, %17 : vector<8x1xf32>
    %c0_9 = arith.constant 0 : index
    %c0_10 = arith.constant 0 : index
    %19 = vector.load %arg4[%c0_9, %c0_10] : memref<3x1024xf32, #tpu.memory_space<vmem>>, vector<1x1024xf32>
    %20 = vector.broadcast %8 : vector<8x1xf32> to vector<8x1024xf32>
    %21 = vector.broadcast %19 : vector<1x1024xf32> to vector<8x1024xf32>
    %22 = arith.mulf %20, %21 : vector<8x1024xf32>
    %c1_11 = arith.constant 1 : index
    %c0_12 = arith.constant 0 : index
    %23 = vector.load %arg4[%c1_11, %c0_12] : memref<3x1024xf32, #tpu.memory_space<vmem>>, vector<1x1024xf32>
    %24 = vector.broadcast %13 : vector<8x1xf32> to vector<8x1024xf32>
    %25 = vector.broadcast %23 : vector<1x1024xf32> to vector<8x1024xf32>
    %26 = arith.mulf %24, %25 : vector<8x1024xf32>
    %27 = arith.addf %22, %26 : vector<8x1024xf32>
    %c2_13 = arith.constant 2 : index
    %c0_14 = arith.constant 0 : index
    %28 = vector.load %arg4[%c2_13, %c0_14] : memref<3x1024xf32, #tpu.memory_space<vmem>>, vector<1x1024xf32>
    %29 = vector.broadcast %18 : vector<8x1xf32> to vector<8x1024xf32>
    %30 = vector.broadcast %28 : vector<1x1024xf32> to vector<8x1024xf32>
    %31 = arith.mulf %29, %30 : vector<8x1024xf32>
    %32 = arith.addf %27, %31 : vector<8x1024xf32>
    %c0_15 = arith.constant 0 : index
    %c0_16 = arith.constant 0 : index
    %33 = vector.load %arg7[%c0_15, %c0_16] : memref<1x1024xf32, #tpu.memory_space<vmem>>, vector<1x1024xf32>
    %34 = vector.broadcast %33 : vector<1x1024xf32> to vector<8x1024xf32>
    %35 = arith.addf %32, %34 : vector<8x1024xf32>
    %cst_17 = arith.constant 0.000000e+00 : f32
    %36 = vector.broadcast %cst_17 : f32 to vector<8x1024xf32>
    %37 = arith.maximumf %35, %36 : vector<8x1024xf32>
    %38 = vector.broadcast %0 : f32 to vector<8x1024xf32>
    %39 = arith.mulf %38, %37 : vector<8x1024xf32>
    %c0_18 = arith.constant 0 : index
    %c0_19 = arith.constant 0 : index
    %40 = vector.load %arg5[%c0_18, %c0_19] : memref<3x1024xf32, #tpu.memory_space<vmem>>, vector<1x1024xf32>
    %41 = vector.broadcast %8 : vector<8x1xf32> to vector<8x1024xf32>
    %42 = vector.broadcast %40 : vector<1x1024xf32> to vector<8x1024xf32>
    %43 = arith.mulf %41, %42 : vector<8x1024xf32>
    %c1_20 = arith.constant 1 : index
    %c0_21 = arith.constant 0 : index
    %44 = vector.load %arg5[%c1_20, %c0_21] : memref<3x1024xf32, #tpu.memory_space<vmem>>, vector<1x1024xf32>
    %45 = vector.broadcast %13 : vector<8x1xf32> to vector<8x1024xf32>
    %46 = vector.broadcast %44 : vector<1x1024xf32> to vector<8x1024xf32>
    %47 = arith.mulf %45, %46 : vector<8x1024xf32>
    %48 = arith.addf %43, %47 : vector<8x1024xf32>
    %c2_22 = arith.constant 2 : index
    %c0_23 = arith.constant 0 : index
    %49 = vector.load %arg5[%c2_22, %c0_23] : memref<3x1024xf32, #tpu.memory_space<vmem>>, vector<1x1024xf32>
    %50 = vector.broadcast %18 : vector<8x1xf32> to vector<8x1024xf32>
    %51 = vector.broadcast %49 : vector<1x1024xf32> to vector<8x1024xf32>
    %52 = arith.mulf %50, %51 : vector<8x1024xf32>
    %53 = arith.addf %48, %52 : vector<8x1024xf32>
    %c0_24 = arith.constant 0 : index
    %c0_25 = arith.constant 0 : index
    %54 = vector.load %arg8[%c0_24, %c0_25] : memref<1x1024xf32, #tpu.memory_space<vmem>>, vector<1x1024xf32>
    %55 = vector.broadcast %54 : vector<1x1024xf32> to vector<8x1024xf32>
    %56 = arith.addf %53, %55 : vector<8x1024xf32>
    %cst_26 = arith.constant 0.000000e+00 : f32
    %57 = vector.broadcast %cst_26 : f32 to vector<8x1024xf32>
    %58 = arith.maximumf %56, %57 : vector<8x1024xf32>
    %59 = vector.broadcast %1 : f32 to vector<8x1024xf32>
    %60 = arith.mulf %59, %58 : vector<8x1024xf32>
    %61 = arith.addf %39, %60 : vector<8x1024xf32>
    %c0_27 = arith.constant 0 : index
    %c0_28 = arith.constant 0 : index
    %62 = vector.load %arg6[%c0_27, %c0_28] : memref<3x1024xf32, #tpu.memory_space<vmem>>, vector<1x1024xf32>
    %63 = vector.broadcast %8 : vector<8x1xf32> to vector<8x1024xf32>
    %64 = vector.broadcast %62 : vector<1x1024xf32> to vector<8x1024xf32>
    %65 = arith.mulf %63, %64 : vector<8x1024xf32>
    %c1_29 = arith.constant 1 : index
    %c0_30 = arith.constant 0 : index
    %66 = vector.load %arg6[%c1_29, %c0_30] : memref<3x1024xf32, #tpu.memory_space<vmem>>, vector<1x1024xf32>
    %67 = vector.broadcast %13 : vector<8x1xf32> to vector<8x1024xf32>
    %68 = vector.broadcast %66 : vector<1x1024xf32> to vector<8x1024xf32>
    %69 = arith.mulf %67, %68 : vector<8x1024xf32>
    %70 = arith.addf %65, %69 : vector<8x1024xf32>
    %c2_31 = arith.constant 2 : index
    %c0_32 = arith.constant 0 : index
    %71 = vector.load %arg6[%c2_31, %c0_32] : memref<3x1024xf32, #tpu.memory_space<vmem>>, vector<1x1024xf32>
    %72 = vector.broadcast %18 : vector<8x1xf32> to vector<8x1024xf32>
    %73 = vector.broadcast %71 : vector<1x1024xf32> to vector<8x1024xf32>
    %74 = arith.mulf %72, %73 : vector<8x1024xf32>
    %75 = arith.addf %70, %74 : vector<8x1024xf32>
    %c0_33 = arith.constant 0 : index
    %c0_34 = arith.constant 0 : index
    %76 = vector.load %arg9[%c0_33, %c0_34] : memref<1x1024xf32, #tpu.memory_space<vmem>>, vector<1x1024xf32>
    %77 = vector.broadcast %76 : vector<1x1024xf32> to vector<8x1024xf32>
    %78 = arith.addf %75, %77 : vector<8x1024xf32>
    %cst_35 = arith.constant 0.000000e+00 : f32
    %79 = vector.broadcast %cst_35 : f32 to vector<8x1024xf32>
    %80 = arith.maximumf %78, %79 : vector<8x1024xf32>
    %81 = vector.broadcast %2 : f32 to vector<8x1024xf32>
    %82 = arith.mulf %81, %80 : vector<8x1024xf32>
    %83 = arith.addf %61, %82 : vector<8x1024xf32>
    %84 = vector.broadcast %3 : f32 to vector<8x1024xf32>
    %85 = arith.addf %83, %84 : vector<8x1024xf32>
    %cst_36 = arith.constant 0.000000e+00 : f32
    %86 = vector.broadcast %cst_36 : f32 to vector<8x1024xf32>
    %87 = arith.maximumf %85, %86 : vector<8x1024xf32>
    %c4 = arith.constant 4 : index
    %88 = memref.load %arg1[%c4] : memref<9xf32, #tpu.memory_space<smem>>
    %c5 = arith.constant 5 : index
    %89 = memref.load %arg1[%c5] : memref<9xf32, #tpu.memory_space<smem>>
    %c6 = arith.constant 6 : index
    %90 = memref.load %arg1[%c6] : memref<9xf32, #tpu.memory_space<smem>>
    %c7 = arith.constant 7 : index
    %91 = memref.load %arg1[%c7] : memref<9xf32, #tpu.memory_space<smem>>
    %c0_37 = arith.constant 0 : index
    %c0_38 = arith.constant 0 : index
    %92 = vector.load %arg3[%c0_37, %c0_38] : memref<8x768xf32, #tpu.memory_space<vmem>>, vector<8x256xf32>
    %cst_39 = arith.constant dense<0.000000e+00> : vector<8xf32>
    %93 = vector.multi_reduction <add>, %92, %cst_39 [1] : vector<8x256xf32> to vector<8xf32>
    %94 = vector.shape_cast %93 : vector<8xf32> to vector<8x1xf32>
    %cst_40 = arith.constant 2.560000e+02 : f32
    %95 = vector.broadcast %cst_40 : f32 to vector<8x1xf32>
    %96 = arith.divf %94, %95 : vector<8x1xf32>
    %c0_41 = arith.constant 0 : index
    %c256_42 = arith.constant 256 : index
    %97 = vector.load %arg3[%c0_41, %c256_42] : memref<8x768xf32, #tpu.memory_space<vmem>>, vector<8x256xf32>
    %cst_43 = arith.constant dense<0.000000e+00> : vector<8xf32>
    %98 = vector.multi_reduction <add>, %97, %cst_43 [1] : vector<8x256xf32> to vector<8xf32>
    %99 = vector.shape_cast %98 : vector<8xf32> to vector<8x1xf32>
    %cst_44 = arith.constant 2.560000e+02 : f32
    %100 = vector.broadcast %cst_44 : f32 to vector<8x1xf32>
    %101 = arith.divf %99, %100 : vector<8x1xf32>
    %c0_45 = arith.constant 0 : index
    %c512_46 = arith.constant 512 : index
    %102 = vector.load %arg3[%c0_45, %c512_46] : memref<8x768xf32, #tpu.memory_space<vmem>>, vector<8x256xf32>
    %cst_47 = arith.constant dense<0.000000e+00> : vector<8xf32>
    %103 = vector.multi_reduction <add>, %102, %cst_47 [1] : vector<8x256xf32> to vector<8xf32>
    %104 = vector.shape_cast %103 : vector<8xf32> to vector<8x1xf32>
    %cst_48 = arith.constant 2.560000e+02 : f32
    %105 = vector.broadcast %cst_48 : f32 to vector<8x1xf32>
    %106 = arith.divf %104, %105 : vector<8x1xf32>
    %c0_49 = arith.constant 0 : index
    %c0_50 = arith.constant 0 : index
    %107 = vector.load %arg10[%c0_49, %c0_50] : memref<3x1024xf32, #tpu.memory_space<vmem>>, vector<1x1024xf32>
    %108 = vector.broadcast %96 : vector<8x1xf32> to vector<8x1024xf32>
    %109 = vector.broadcast %107 : vector<1x1024xf32> to vector<8x1024xf32>
    %110 = arith.mulf %108, %109 : vector<8x1024xf32>
    %c1_51 = arith.constant 1 : index
    %c0_52 = arith.constant 0 : index
    %111 = vector.load %arg10[%c1_51, %c0_52] : memref<3x1024xf32, #tpu.memory_space<vmem>>, vector<1x1024xf32>
    %112 = vector.broadcast %101 : vector<8x1xf32> to vector<8x1024xf32>
    %113 = vector.broadcast %111 : vector<1x1024xf32> to vector<8x1024xf32>
    %114 = arith.mulf %112, %113 : vector<8x1024xf32>
    %115 = arith.addf %110, %114 : vector<8x1024xf32>
    %c2_53 = arith.constant 2 : index
    %c0_54 = arith.constant 0 : index
    %116 = vector.load %arg10[%c2_53, %c0_54] : memref<3x1024xf32, #tpu.memory_space<vmem>>, vector<1x1024xf32>
    %117 = vector.broadcast %106 : vector<8x1xf32> to vector<8x1024xf32>
    %118 = vector.broadcast %116 : vector<1x1024xf32> to vector<8x1024xf32>
    %119 = arith.mulf %117, %118 : vector<8x1024xf32>
    %120 = arith.addf %115, %119 : vector<8x1024xf32>
    %c0_55 = arith.constant 0 : index
    %c0_56 = arith.constant 0 : index
    %121 = vector.load %arg13[%c0_55, %c0_56] : memref<1x1024xf32, #tpu.memory_space<vmem>>, vector<1x1024xf32>
    %122 = vector.broadcast %121 : vector<1x1024xf32> to vector<8x1024xf32>
    %123 = arith.addf %120, %122 : vector<8x1024xf32>
    %cst_57 = arith.constant 0.000000e+00 : f32
    %124 = vector.broadcast %cst_57 : f32 to vector<8x1024xf32>
    %125 = arith.maximumf %123, %124 : vector<8x1024xf32>
    %126 = vector.broadcast %88 : f32 to vector<8x1024xf32>
    %127 = arith.mulf %126, %125 : vector<8x1024xf32>
    %c0_58 = arith.constant 0 : index
    %c0_59 = arith.constant 0 : index
    %128 = vector.load %arg11[%c0_58, %c0_59] : memref<3x1024xf32, #tpu.memory_space<vmem>>, vector<1x1024xf32>
    %129 = vector.broadcast %96 : vector<8x1xf32> to vector<8x1024xf32>
    %130 = vector.broadcast %128 : vector<1x1024xf32> to vector<8x1024xf32>
    %131 = arith.mulf %129, %130 : vector<8x1024xf32>
    %c1_60 = arith.constant 1 : index
    %c0_61 = arith.constant 0 : index
    %132 = vector.load %arg11[%c1_60, %c0_61] : memref<3x1024xf32, #tpu.memory_space<vmem>>, vector<1x1024xf32>
    %133 = vector.broadcast %101 : vector<8x1xf32> to vector<8x1024xf32>
    %134 = vector.broadcast %132 : vector<1x1024xf32> to vector<8x1024xf32>
    %135 = arith.mulf %133, %134 : vector<8x1024xf32>
    %136 = arith.addf %131, %135 : vector<8x1024xf32>
    %c2_62 = arith.constant 2 : index
    %c0_63 = arith.constant 0 : index
    %137 = vector.load %arg11[%c2_62, %c0_63] : memref<3x1024xf32, #tpu.memory_space<vmem>>, vector<1x1024xf32>
    %138 = vector.broadcast %106 : vector<8x1xf32> to vector<8x1024xf32>
    %139 = vector.broadcast %137 : vector<1x1024xf32> to vector<8x1024xf32>
    %140 = arith.mulf %138, %139 : vector<8x1024xf32>
    %141 = arith.addf %136, %140 : vector<8x1024xf32>
    %c0_64 = arith.constant 0 : index
    %c0_65 = arith.constant 0 : index
    %142 = vector.load %arg14[%c0_64, %c0_65] : memref<1x1024xf32, #tpu.memory_space<vmem>>, vector<1x1024xf32>
    %143 = vector.broadcast %142 : vector<1x1024xf32> to vector<8x1024xf32>
    %144 = arith.addf %141, %143 : vector<8x1024xf32>
    %cst_66 = arith.constant 0.000000e+00 : f32
    %145 = vector.broadcast %cst_66 : f32 to vector<8x1024xf32>
    %146 = arith.maximumf %144, %145 : vector<8x1024xf32>
    %147 = vector.broadcast %89 : f32 to vector<8x1024xf32>
    %148 = arith.mulf %147, %146 : vector<8x1024xf32>
    %149 = arith.addf %127, %148 : vector<8x1024xf32>
    %c0_67 = arith.constant 0 : index
    %c0_68 = arith.constant 0 : index
    %150 = vector.load %arg12[%c0_67, %c0_68] : memref<3x1024xf32, #tpu.memory_space<vmem>>, vector<1x1024xf32>
    %151 = vector.broadcast %96 : vector<8x1xf32> to vector<8x1024xf32>
    %152 = vector.broadcast %150 : vector<1x1024xf32> to vector<8x1024xf32>
    %153 = arith.mulf %151, %152 : vector<8x1024xf32>
    %c1_69 = arith.constant 1 : index
    %c0_70 = arith.constant 0 : index
    %154 = vector.load %arg12[%c1_69, %c0_70] : memref<3x1024xf32, #tpu.memory_space<vmem>>, vector<1x1024xf32>
    %155 = vector.broadcast %101 : vector<8x1xf32> to vector<8x1024xf32>
    %156 = vector.broadcast %154 : vector<1x1024xf32> to vector<8x1024xf32>
    %157 = arith.mulf %155, %156 : vector<8x1024xf32>
    %158 = arith.addf %153, %157 : vector<8x1024xf32>
    %c2_71 = arith.constant 2 : index
    %c0_72 = arith.constant 0 : index
    %159 = vector.load %arg12[%c2_71, %c0_72] : memref<3x1024xf32, #tpu.memory_space<vmem>>, vector<1x1024xf32>
    %160 = vector.broadcast %106 : vector<8x1xf32> to vector<8x1024xf32>
    %161 = vector.broadcast %159 : vector<1x1024xf32> to vector<8x1024xf32>
    %162 = arith.mulf %160, %161 : vector<8x1024xf32>
    %163 = arith.addf %158, %162 : vector<8x1024xf32>
    %c0_73 = arith.constant 0 : index
    %c0_74 = arith.constant 0 : index
    %164 = vector.load %arg15[%c0_73, %c0_74] : memref<1x1024xf32, #tpu.memory_space<vmem>>, vector<1x1024xf32>
    %165 = vector.broadcast %164 : vector<1x1024xf32> to vector<8x1024xf32>
    %166 = arith.addf %163, %165 : vector<8x1024xf32>
    %cst_75 = arith.constant 0.000000e+00 : f32
    %167 = vector.broadcast %cst_75 : f32 to vector<8x1024xf32>
    %168 = arith.maximumf %166, %167 : vector<8x1024xf32>
    %169 = vector.broadcast %90 : f32 to vector<8x1024xf32>
    %170 = arith.mulf %169, %168 : vector<8x1024xf32>
    %171 = arith.addf %149, %170 : vector<8x1024xf32>
    %172 = vector.broadcast %91 : f32 to vector<8x1024xf32>
    %173 = arith.addf %171, %172 : vector<8x1024xf32>
    %cst_76 = arith.constant 0.000000e+00 : f32
    %174 = vector.broadcast %cst_76 : f32 to vector<8x1024xf32>
    %175 = arith.maximumf %173, %174 : vector<8x1024xf32>
    %176 = tpu.concatenate %87, %175 in 0 : vector<8x1024xf32>, vector<8x1024xf32> -> vector<16x1024xf32>
    %177 = arith.truncf %176 : vector<16x1024xf32> to vector<16x1024xbf16>
    %c0_77 = arith.constant 0 : index
    %c0_78 = arith.constant 0 : index
    %178 = vector.load %arg16[%c0_77, %c0_78] : memref<1024x256xbf16, #tpu.memory_space<vmem>>, vector<1024x256xbf16>
    %cst_79 = arith.constant dense<0.000000e+00> : vector<16x256xf32>
    %179 = tpu.matmul %177, %178, %cst_79 {dimension_numbers = #tpu.dot_dimension_numbers<[1], [0], [0], [1], [0, 0, 1, 1], [], []>} : vector<16x1024xbf16>, vector<1024x256xbf16>, vector<16x256xf32> -> vector<16x256xf32>
    %180 = vector.extract_strided_slice %179 {offsets = [0, 0], sizes = [16, 128], strides = [1, 1]} : vector<16x256xf32> to vector<16x128xf32>
    %c0_80 = arith.constant 0 : index
    %c0_81 = arith.constant 0 : index
    %181 = vector.load %arg17[%c0_80, %c0_81] : memref<1x128xf32, #tpu.memory_space<vmem>>, vector<1x128xf32>
    %182 = vector.broadcast %181 : vector<1x128xf32> to vector<16x128xf32>
    %183 = arith.addf %180, %182 : vector<16x128xf32>
    %cst_82 = arith.constant 0.000000e+00 : f32
    %184 = vector.broadcast %cst_82 : f32 to vector<16x128xf32>
    %185 = arith.maximumf %183, %184 : vector<16x128xf32>
    %c0_83 = arith.constant 0 : index
    %c0_84 = arith.constant 0 : index
    %186 = vector.load %arg18[%c0_83, %c0_84] : memref<1x128xf32, #tpu.memory_space<vmem>>, vector<1x128xf32>
    %187 = vector.broadcast %186 : vector<1x128xf32> to vector<16x128xf32>
    %188 = arith.mulf %185, %187 : vector<16x128xf32>
    %cst_85 = arith.constant dense<0.000000e+00> : vector<16xf32>
    %189 = vector.multi_reduction <add>, %188, %cst_85 [1] : vector<16x128xf32> to vector<16xf32>
    %190 = vector.shape_cast %189 : vector<16xf32> to vector<16x1xf32>
    %c8 = arith.constant 8 : index
    %191 = memref.load %arg1[%c8] : memref<9xf32, #tpu.memory_space<smem>>
    %192 = vector.broadcast %191 : f32 to vector<16x1xf32>
    %193 = arith.addf %190, %192 : vector<16x1xf32>
    %194 = vector.extract_strided_slice %193 {offsets = [0, 0], sizes = [8, 1], strides = [1, 1]} : vector<16x1xf32> to vector<8x1xf32>
    %195 = vector.extract_strided_slice %193 {offsets = [8, 0], sizes = [8, 1], strides = [1, 1]} : vector<16x1xf32> to vector<8x1xf32>
    %196 = arith.maximumf %194, %195 : vector<8x1xf32>
    %197 = arith.subf %194, %196 : vector<8x1xf32>
    %198 = math.exp %197 : vector<8x1xf32>
    %199 = arith.subf %195, %196 : vector<8x1xf32>
    %200 = math.exp %199 : vector<8x1xf32>
    %201 = arith.addf %198, %200 : vector<8x1xf32>
    %202 = arith.divf %198, %201 : vector<8x1xf32>
    %203 = arith.divf %200, %201 : vector<8x1xf32>
    %204 = vector.extract_strided_slice %179 {offsets = [0, 128], sizes = [8, 128], strides = [1, 1]} : vector<16x256xf32> to vector<8x128xf32>
    %205 = vector.extract_strided_slice %179 {offsets = [8, 128], sizes = [8, 128], strides = [1, 1]} : vector<16x256xf32> to vector<8x128xf32>
    %206 = vector.broadcast %202 : vector<8x1xf32> to vector<8x128xf32>
    %207 = arith.mulf %206, %204 : vector<8x128xf32>
    %208 = vector.broadcast %203 : vector<8x1xf32> to vector<8x128xf32>
    %209 = arith.mulf %208, %205 : vector<8x128xf32>
    %210 = arith.addf %207, %209 : vector<8x128xf32>
    %c0_86 = arith.constant 0 : index
    %c0_87 = arith.constant 0 : index
    %211 = vector.load %arg19[%c0_86, %c0_87] : memref<1x128xf32, #tpu.memory_space<vmem>>, vector<1x128xf32>
    %212 = vector.broadcast %211 : vector<1x128xf32> to vector<8x128xf32>
    %213 = arith.addf %210, %212 : vector<8x128xf32>
    %c0_88 = arith.constant 0 : index
    %c0_89 = arith.constant 0 : index
    %214 = vector.load %arg20[%c0_88, %c0_89] : memref<8x128xf32, #tpu.memory_space<vmem>>, vector<8x128xf32>
    tpu.vector_store %arg20[%c0_88, %c0_89], %213 {strides = array<i32>} : memref<8x128xf32, #tpu.memory_space<vmem>>, vector<8x128xf32>,
    return
  }
  func.func @transform_0(%arg0: i32) -> i32 {
    %c0_i32 = arith.constant 0 : i32
    %c0_i32_0 = arith.constant 0 : i32
    return %c0_i32 : i32
  }
  func.func @transform_1(%arg0: i32) -> (i32, i32) {
    %c0_i32 = arith.constant 0 : i32
    %c0_i32_0 = arith.constant 0 : i32
    return %arg0, %c0_i32 : i32, i32
  }
  func.func @transform_2(%arg0: i32) -> (i32, i32) {
    %c0_i32 = arith.constant 0 : i32
    %c0_i32_0 = arith.constant 0 : i32
    return %arg0, %c0_i32 : i32, i32
  }
  func.func @transform_3(%arg0: i32) -> (i32, i32) {
    %c0_i32 = arith.constant 0 : i32
    %c0_i32_0 = arith.constant 0 : i32
    %c0_i32_1 = arith.constant 0 : i32
    return %c0_i32, %c0_i32_0 : i32, i32
  }
  func.func @transform_4(%arg0: i32) -> (i32, i32) {
    %c0_i32 = arith.constant 0 : i32
    %c0_i32_0 = arith.constant 0 : i32
    %c0_i32_1 = arith.constant 0 : i32
    return %c0_i32, %c0_i32_0 : i32, i32
  }
  func.func @transform_5(%arg0: i32) -> (i32, i32) {
    %c0_i32 = arith.constant 0 : i32
    %c0_i32_0 = arith.constant 0 : i32
    %c0_i32_1 = arith.constant 0 : i32
    return %c0_i32, %c0_i32_0 : i32, i32
  }
  func.func @transform_6(%arg0: i32) -> (i32, i32) {
    %c0_i32 = arith.constant 0 : i32
    %c0_i32_0 = arith.constant 0 : i32
    %c0_i32_1 = arith.constant 0 : i32
    return %c0_i32, %c0_i32_0 : i32, i32
  }
  func.func @transform_7(%arg0: i32) -> (i32, i32) {
    %c0_i32 = arith.constant 0 : i32
    %c0_i32_0 = arith.constant 0 : i32
    %c0_i32_1 = arith.constant 0 : i32
    return %c0_i32, %c0_i32_0 : i32, i32
  }
  func.func @transform_8(%arg0: i32) -> (i32, i32) {
    %c0_i32 = arith.constant 0 : i32
    %c0_i32_0 = arith.constant 0 : i32
    %c0_i32_1 = arith.constant 0 : i32
    return %c0_i32, %c0_i32_0 : i32, i32
  }
  func.func @transform_9(%arg0: i32) -> (i32, i32) {
    %c0_i32 = arith.constant 0 : i32
    %c0_i32_0 = arith.constant 0 : i32
    %c0_i32_1 = arith.constant 0 : i32
    return %c0_i32, %c0_i32_0 : i32, i32
  }
  func.func @transform_10(%arg0: i32) -> (i32, i32) {
    %c0_i32 = arith.constant 0 : i32
    %c0_i32_0 = arith.constant 0 : i32
    %c0_i32_1 = arith.constant 0 : i32
    return %c0_i32, %c0_i32_0 : i32, i32
  }
  func.func @transform_11(%arg0: i32) -> (i32, i32) {
    %c0_i32 = arith.constant 0 : i32
    %c0_i32_0 = arith.constant 0 : i32
    %c0_i32_1 = arith.constant 0 : i32
    return %c0_i32, %c0_i32_0 : i32, i32
  }
  func.func @transform_12(%arg0: i32) -> (i32, i32) {
    %c0_i32 = arith.constant 0 : i32
    %c0_i32_0 = arith.constant 0 : i32
    %c0_i32_1 = arith.constant 0 : i32
    return %c0_i32, %c0_i32_0 : i32, i32
  }
  func.func @transform_13(%arg0: i32) -> (i32, i32) {
    %c0_i32 = arith.constant 0 : i32
    %c0_i32_0 = arith.constant 0 : i32
    %c0_i32_1 = arith.constant 0 : i32
    return %c0_i32, %c0_i32_0 : i32, i32
  }
  func.func @transform_14(%arg0: i32) -> (i32, i32) {
    %c0_i32 = arith.constant 0 : i32
    %c0_i32_0 = arith.constant 0 : i32
    %c0_i32_1 = arith.constant 0 : i32
    return %c0_i32, %c0_i32_0 : i32, i32
  }
  func.func @transform_15(%arg0: i32) -> (i32, i32) {
    %c0_i32 = arith.constant 0 : i32
    %c0_i32_0 = arith.constant 0 : i32
    %c0_i32_1 = arith.constant 0 : i32
    return %c0_i32, %c0_i32_0 : i32, i32
  }
  func.func @transform_16(%arg0: i32) -> (i32, i32) {
    %c0_i32 = arith.constant 0 : i32
    %c0_i32_0 = arith.constant 0 : i32
    %c0_i32_1 = arith.constant 0 : i32
    return %c0_i32, %c0_i32_0 : i32, i32
  }
  func.func @transform_17(%arg0: i32) -> (i32, i32) {
    %c0_i32 = arith.constant 0 : i32
    %c0_i32_0 = arith.constant 0 : i32
    %c0_i32_1 = arith.constant 0 : i32
    return %c0_i32, %c0_i32_0 : i32, i32
  }
  func.func @transform_18(%arg0: i32) -> (i32, i32) {
    %c0_i32 = arith.constant 0 : i32
    %c0_i32_0 = arith.constant 0 : i32
    %c0_i32_1 = arith.constant 0 : i32
    return %c0_i32, %c0_i32_0 : i32, i32
  }
  func.func @transform_19(%arg0: i32) -> (i32, i32) {
    %c0_i32 = arith.constant 0 : i32
    %c0_i32_0 = arith.constant 0 : i32
    return %arg0, %c0_i32 : i32, i32
  }
}

</mosaic_0001>

<llo_original>
// kernel: tpu_custom_call.1
$region0: #{tpu_custom_call.1}
  #allocation0 [shape = 'u32[]', space=smem, size = 0x4, offset = 0x4, fixed_abs, tag = 'smem constant byte address 0x4 - core index']
  #allocation1 [shape = 'u32[144,128]{1,0:T(1,128)}', space=vmem, size = 0x12000, scoped, tag = 'internal scratch']
  %s0 = inlined_call_operand.hbm [shape: f32[9], index: 0, kind: input, shape index: {}]
  %s1 = inlined_call_operand.hbm [shape: f32[8,768], index: 1, kind: input, shape index: {}]
  %s2 = inlined_call_operand.hbm [shape: f32[8,768], index: 2, kind: input, shape index: {}]
  %s3 = inlined_call_operand.hbm [shape: f32[3,1024], index: 3, kind: input, shape index: {}]
  %s4 = inlined_call_operand.hbm [shape: f32[3,1024], index: 4, kind: input, shape index: {}]
  %s5 = inlined_call_operand.hbm [shape: f32[3,1024], index: 5, kind: input, shape index: {}]
  %s6 = inlined_call_operand.hbm [shape: f32[1,1024], index: 6, kind: input, shape index: {}]
  %s7 = inlined_call_operand.hbm [shape: f32[1,1024], index: 7, kind: input, shape index: {}]
  %s8 = inlined_call_operand.hbm [shape: f32[1,1024], index: 8, kind: input, shape index: {}]
  %s9 = inlined_call_operand.vmem [shape: f32[3,1024], index: 9, kind: input, shape index: {}]
  %s10 = inlined_call_operand.hbm [shape: f32[3,1024], index: 10, kind: input, shape index: {}]
  %s11 = inlined_call_operand.hbm [shape: f32[3,1024], index: 11, kind: input, shape index: {}]
  %s12 = inlined_call_operand.vmem [shape: f32[1,1024], index: 12, kind: input, shape index: {}]
  %s13 = inlined_call_operand.vmem [shape: f32[1,1024], index: 13, kind: input, shape index: {}]
  %s14 = inlined_call_operand.hbm [shape: f32[1,1024], index: 14, kind: input, shape index: {}]
  %s15 = inlined_call_operand.hbm [shape: bf16[1024,256], index: 15, kind: input, shape index: {}]
  %s16 = inlined_call_operand.vmem [shape: f32[1,128], index: 16, kind: input, shape index: {}]
  %s17 = inlined_call_operand.vmem [shape: f32[1,128], index: 17, kind: input, shape index: {}]
  %s18 = inlined_call_operand.vmem [shape: f32[1,128], index: 18, kind: input, shape index: {}]
  %s19 = inlined_call_operand.hbm [shape: f32[8,128], index: 19, kind: output, shape index: {}]
  %s20 = sld [smem:[#allocation0]]
  $region138: #{tpu_custom_call.1} parent=0
    _
  %s22 = ssub.s32 1, %s20
  %s23 = scalar_select 0, %s22, %s20
  $region1: #{tpu_custom_call.1} parent=0
    #allocation2 [shape = 'u8[512]{0}', space=smem, size = 0x200, scoped, tag = 'input window, operand 0, single buffered']
    #allocation3 [shape = 's32[1]{0}', space=sflag, size = 0x4, scoped, tag = 'scoped memory for tpu_custom_call.1']
    #allocation4 [shape = 's32[1]{0}', space=sflag, size = 0x4, scoped, tag = 'scoped memory for tpu_custom_call.1']
    #allocation5 [shape = 's32[1]{0}', space=sflag, size = 0x4, scoped, tag = 'scoped memory for tpu_custom_call.1']
    #allocation6 [shape = 'u8[24576]{0}', space=vmem, size = 0x6000, scoped, tag = 'input window, operand 1, single buffered']
    #allocation7 [shape = 'u8[24576]{0}', space=vmem, size = 0x6000, scoped, tag = 'input window, operand 2, single buffered']
    #allocation8 [shape = 's32[1]{0}', space=sflag, size = 0x4, scoped, tag = 'scoped memory for tpu_custom_call.1']
    #allocation9 [shape = 'u8[16384]{0}', space=vmem, size = 0x4000, scoped, tag = 'input window, operand 3, single buffered']
    #allocation10 [shape = 'u8[16384]{0}', space=vmem, size = 0x4000, scoped, tag = 'input window, operand 4, single buffered']
    #allocation11 [shape = 's32[1]{0}', space=sflag, size = 0x4, scoped, tag = 'scoped memory for tpu_custom_call.1']
    #allocation12 [shape = 'u8[16384]{0}', space=vmem, size = 0x4000, scoped, tag = 'input window, operand 5, single buffered']
    #allocation13 [shape = 'u8[4096]{0}', space=vmem, size = 0x1000, scoped, tag = 'input window, operand 6, single buffered']
    #allocation14 [shape = 's32[1]{0}', space=sflag, size = 0x4, scoped, tag = 'scoped memory for tpu_custom_call.1']
    #allocation15 [shape = 'u8[4096]{0}', space=vmem, size = 0x1000, scoped, tag = 'input window, operand 7, single buffered']
    #allocation16 [shape = 'u8[4096]{0}', space=vmem, size = 0x1000, scoped, tag = 'input window, operand 8, single buffered']
    #allocation17 [shape = 's32[1]{0}', space=sflag, size = 0x4, scoped, tag = 'scoped memory for tpu_custom_call.1']
    #allocation18 [shape = 'u8[16384]{0}', space=vmem, size = 0x4000, scoped, tag = 'input window, operand 10, single buffered']
    #allocation19 [shape = 'u8[16384]{0}', space=vmem, size = 0x4000, scoped, tag = 'input window, operand 11, single buffered']
    #allocation20 [shape = 's32[1]{0}', space=sflag, size = 0x4, scoped, tag = 'scoped memory for tpu_custom_call.1']
    #allocation21 [shape = 'u8[4096]{0}', space=vmem, size = 0x1000, scoped, tag = 'input window, operand 14, single buffered']
    #allocation22 [shape = 'u8[524288]{0}', space=vmem, size = 0x80000, scoped, tag = 'input window, operand 15, single buffered']
    #allocation23 [shape = 's32[1]{0}', space=sflag, size = 0x4, scoped, tag = 'scoped memory for tpu_custom_call.1']
    #allocation24 [shape = 'u8[4096]{0}', space=vmem, size = 0x1000, scoped, tag = 'output window, operand 0, single buffered']
    %24 = vsyncpa [#allocation5], 0
    %25 = vsyncpa [#allocation3], 0
    %26 = vsyncpa [#allocation8], 0
    %27 = vsyncpa [#allocation11], 0
    %28 = vsyncpa [#allocation14], 0
    %29 = vsyncpa [#allocation17], 0
    %30 = vsyncpa [#allocation20], 0
    %31 = vsyncpa [#allocation23], 0
    %32 = vsyncpa [#allocation4], 0
    // Predicated region
    $region2: #{tpu_custom_call.1} parent=1 // pred_check
      _
    $region3: #{tpu_custom_call.1} parent=1 // pred_check_branch
      %34 = sbr.rel (0) target = $region5
    $region4: #{tpu_custom_call.1} parent=1 // pred_region
      %s36 = ssub.s32 16, 16
      %37 = vsyncadd [#allocation5], %s36
      %40 = dma.hbm_to_smem %s0, 16, [#allocation2], [#allocation5]
    $region5: #{tpu_custom_call.1} parent=1 // pred_fallthru
      _
    // Predicated region
    $region6: #{tpu_custom_call.1} parent=1 // pred_check
      _
    $region7: #{tpu_custom_call.1} parent=1 // pred_check_branch
      %42 = sbr.rel (0) target = $region9
    $region8: #{tpu_custom_call.1} parent=1 // pred_region
      %s44 = ssub.s32 768, 768
      %45 = vsyncadd [#allocation3], %s44
      %s47 = sshll.u32 [#allocation6], 4
      %s48 = int_to_ptr.vmem [resolvable:$true] %s47
      %50 = dma.hbm_to_vmem [thread:$0]  %s1, 768, %s48, [#allocation3]
    $region9: #{tpu_custom_call.1} parent=1 // pred_fallthru
      _
    // Predicated region
    $region10: #{tpu_custom_call.1} parent=1 // pred_check
      _
    $region11: #{tpu_custom_call.1} parent=1 // pred_check_branch
      %52 = sbr.rel (0) target = $region13
    $region12: #{tpu_custom_call.1} parent=1 // pred_region
      %s54 = ssub.s32 768, 768
      %55 = vsyncadd [#allocation8], %s54
      %s57 = sshll.u32 [#allocation7], 4
      %s58 = int_to_ptr.vmem [resolvable:$true] %s57
      %60 = dma.hbm_to_vmem [thread:$0]  %s2, 768, %s58, [#allocation8]
    $region13: #{tpu_custom_call.1} parent=1 // pred_fallthru
      _
    // Predicated region
    $region14: #{tpu_custom_call.1} parent=1 // pred_check
      _
    $region15: #{tpu_custom_call.1} parent=1 // pred_check_branch
      %62 = sbr.rel (0) target = $region17
    $region16: #{tpu_custom_call.1} parent=1 // pred_region
      %s64 = ssub.s32 512, 512
      %65 = vsyncadd [#allocation8], %s64
      %s67 = sshll.u32 [#allocation9], 4
      %s68 = int_to_ptr.vmem [resolvable:$true] %s67
      %70 = dma.hbm_to_vmem [thread:$0]  %s3, 512, %s68, [#allocation8]
    $region17: #{tpu_custom_call.1} parent=1 // pred_fallthru
      _
    // Predicated region
    $region18: #{tpu_custom_call.1} parent=1 // pred_check
      _
    $region19: #{tpu_custom_call.1} parent=1 // pred_check_branch
      %72 = sbr.rel (0) target = $region21
    $region20: #{tpu_custom_call.1} parent=1 // pred_region
      %s74 = ssub.s32 512, 512
      %75 = vsyncadd [#allocation11], %s74
      %s77 = sshll.u32 [#allocation10], 4
      %s78 = int_to_ptr.vmem [resolvable:$true] %s77
      %80 = dma.hbm_to_vmem [thread:$0]  %s4, 512, %s78, [#allocation11]
    $region21: #{tpu_custom_call.1} parent=1 // pred_fallthru
      _
    // Predicated region
    $region22: #{tpu_custom_call.1} parent=1 // pred_check
      _
    $region23: #{tpu_custom_call.1} parent=1 // pred_check_branch
      %82 = sbr.rel (0) target = $region25
    $region24: #{tpu_custom_call.1} parent=1 // pred_region
      %s84 = ssub.s32 512, 512
      %85 = vsyncadd [#allocation11], %s84
      %s87 = sshll.u32 [#allocation12], 4
      %s88 = int_to_ptr.vmem [resolvable:$true] %s87
      %90 = dma.hbm_to_vmem [thread:$0]  %s5, 512, %s88, [#allocation11]
    $region25: #{tpu_custom_call.1} parent=1 // pred_fallthru
      _
    // Predicated region
    $region26: #{tpu_custom_call.1} parent=1 // pred_check
      _
    $region27: #{tpu_custom_call.1} parent=1 // pred_check_branch
      %92 = sbr.rel (0) target = $region29
    $region28: #{tpu_custom_call.1} parent=1 // pred_region
      %s94 = ssub.s32 128, 128
      %95 = vsyncadd [#allocation14], %s94
      %s97 = sshll.u32 [#allocation13], 4
      %s98 = int_to_ptr.vmem [resolvable:$true] %s97
      %100 = dma.hbm_to_vmem [thread:$0]  %s6, 128, %s98, [#allocation14]
    $region29: #{tpu_custom_call.1} parent=1 // pred_fallthru
      _
    // Predicated region
    $region30: #{tpu_custom_call.1} parent=1 // pred_check
      _
    $region31: #{tpu_custom_call.1} parent=1 // pred_check_branch
      %102 = sbr.rel (0) target = $region33
    $region32: #{tpu_custom_call.1} parent=1 // pred_region
      %s104 = ssub.s32 128, 128
      %105 = vsyncadd [#allocation14], %s104
      %s107 = sshll.u32 [#allocation15], 4
      %s108 = int_to_ptr.vmem [resolvable:$true] %s107
      %110 = dma.hbm_to_vmem [thread:$0]  %s7, 128, %s108, [#allocation14]
    $region33: #{tpu_custom_call.1} parent=1 // pred_fallthru
      _
    // Predicated region
    $region34: #{tpu_custom_call.1} parent=1 // pred_check
      _
    $region35: #{tpu_custom_call.1} parent=1 // pred_check_branch
      %112 = sbr.rel (0) target = $region37
    $region36: #{tpu_custom_call.1} parent=1 // pred_region
      %s114 = ssub.s32 128, 128
      %115 = vsyncadd [#allocation17], %s114
      %s117 = sshll.u32 [#allocation16], 4
      %s118 = int_to_ptr.vmem [resolvable:$true] %s117
      %120 = dma.hbm_to_vmem [thread:$0]  %s8, 128, %s118, [#allocation17]
    $region37: #{tpu_custom_call.1} parent=1 // pred_fallthru
      _
    // Predicated region
    $region38: #{tpu_custom_call.1} parent=1 // pred_check
      _
    $region39: #{tpu_custom_call.1} parent=1 // pred_check_branch
      %122 = sbr.rel (0) target = $region41
    $region40: #{tpu_custom_call.1} parent=1 // pred_region
      _
    $region41: #{tpu_custom_call.1} parent=1 // pred_fallthru
      _
    // Predicated region
    $region42: #{tpu_custom_call.1} parent=1 // pred_check
      _
    $region43: #{tpu_custom_call.1} parent=1 // pred_check_branch
      %124 = sbr.rel (0) target = $region45
    $region44: #{tpu_custom_call.1} parent=1 // pred_region
      %s126 = ssub.s32 512, 512
      %127 = vsyncadd [#allocation17], %s126
      %s129 = sshll.u32 [#allocation18], 4
      %s130 = int_to_ptr.vmem [resolvable:$true] %s129
      %132 = dma.hbm_to_vmem [thread:$0]  %s10, 512, %s130, [#allocation17]
    $region45: #{tpu_custom_call.1} parent=1 // pred_fallthru
      _
    // Predicated region
    $region46: #{tpu_custom_call.1} parent=1 // pred_check
      _
    $region47: #{tpu_custom_call.1} parent=1 // pred_check_branch
      %134 = sbr.rel (0) target = $region49
    $region48: #{tpu_custom_call.1} parent=1 // pred_region
      %s136 = ssub.s32 512, 512
      %137 = vsyncadd [#allocation20], %s136
      %s139 = sshll.u32 [#allocation19], 4
      %s140 = int_to_ptr.vmem [resolvable:$true] %s139
      %142 = dma.hbm_to_vmem [thread:$0]  %s11, 512, %s140, [#allocation20]
    $region49: #{tpu_custom_call.1} parent=1 // pred_fallthru
      _
    // Predicated region
    $region50: #{tpu_custom_call.1} parent=1 // pred_check
      _
    $region51: #{tpu_custom_call.1} parent=1 // pred_check_branch
      %144 = sbr.rel (0) target = $region53
    $region52: #{tpu_custom_call.1} parent=1 // pred_region
      _
    $region53: #{tpu_custom_call.1} parent=1 // pred_fallthru
      _
    // Predicated region
    $region54: #{tpu_custom_call.1} parent=1 // pred_check
      _
    $region55: #{tpu_custom_call.1} parent=1 // pred_check_branch
      %146 = sbr.rel (0) target = $region57
    $region56: #{tpu_custom_call.1} parent=1 // pred_region
      _
    $region57: #{tpu_custom_call.1} parent=1 // pred_fallthru
      _
    // Predicated region
    $region58: #{tpu_custom_call.1} parent=1 // pred_check
      _
    $region59: #{tpu_custom_call.1} parent=1 // pred_check_branch
      %148 = sbr.rel (0) target = $region61
    $region60: #{tpu_custom_call.1} parent=1 // pred_region
      %s150 = ssub.s32 128, 128
      %151 = vsyncadd [#allocation20], %s150
      %s153 = sshll.u32 [#allocation21], 4
      %s154 = int_to_ptr.vmem [resolvable:$true] %s153
      %156 = dma.hbm_to_vmem [thread:$0]  %s14, 128, %s154, [#allocation20]
    $region61: #{tpu_custom_call.1} parent=1 // pred_fallthru
      _
    // Predicated region
    $region62: #{tpu_custom_call.1} parent=1 // pred_check
      _
    $region63: #{tpu_custom_call.1} parent=1 // pred_check_branch
      %158 = sbr.rel (0) target = $region65
    $region64: #{tpu_custom_call.1} parent=1 // pred_region
      %s160 = ssub.s32 16384, 16384
      %161 = vsyncadd [#allocation23], %s160
      %s162 = sshll.u32 [#allocation22], 4
      %s163 = int_to_ptr.vmem [resolvable:$true] %s162
      %168 = dma.hbm_to_vmem [thread:$0]  %s15, 16384, %s163, [#allocation23], 128, 128, 8
    $region65: #{tpu_custom_call.1} parent=1 // pred_fallthru
      _
    // Predicated region
    $region66: #{tpu_custom_call.1} parent=1 // pred_check
      _
    $region67: #{tpu_custom_call.1} parent=1 // pred_check_branch
      %170 = sbr.rel (0) target = $region69
    $region68: #{tpu_custom_call.1} parent=1 // pred_region
      _
    $region69: #{tpu_custom_call.1} parent=1 // pred_fallthru
      _
    // Predicated region
    $region70: #{tpu_custom_call.1} parent=1 // pred_check
      _
    $region71: #{tpu_custom_call.1} parent=1 // pred_check_branch
      %172 = sbr.rel (0) target = $region73
    $region72: #{tpu_custom_call.1} parent=1 // pred_region
      _
    $region73: #{tpu_custom_call.1} parent=1 // pred_fallthru
      _
    // Predicated region
    $region74: #{tpu_custom_call.1} parent=1 // pred_check
      _
    $region75: #{tpu_custom_call.1} parent=1 // pred_check_branch
      %174 = sbr.rel (0) target = $region77
    $region76: #{tpu_custom_call.1} parent=1 // pred_region
      _
    $region77: #{tpu_custom_call.1} parent=1 // pred_fallthru
      _
    // Predicated region
    $region78: #{tpu_custom_call.1} parent=1 // pred_check
      _
    $region79: #{tpu_custom_call.1} parent=1 // pred_check_branch
      %176 = sbr.rel (0) target = $region81
    $region80: #{tpu_custom_call.1} parent=1 // pred_region
      %177 = dma.done [#allocation5], 16
    $region81: #{tpu_custom_call.1} parent=1 // pred_fallthru
      _
    // Predicated region
    $region82: #{tpu_custom_call.1} parent=1 // pred_check
      _
    $region83: #{tpu_custom_call.1} parent=1 // pred_check_branch
      %179 = sbr.rel (0) target = $region85
    $region84: #{tpu_custom_call.1} parent=1 // pred_region
      %180 = dma.done [#allocation3], 768
    $region85: #{tpu_custom_call.1} parent=1 // pred_fallthru
      _
    // Predicated region
    $region86: #{tpu_custom_call.1} parent=1 // pred_check
      _
    $region87: #{tpu_custom_call.1} parent=1 // pred_check_branch
      %182 = sbr.rel (0) target = $region89
    $region88: #{tpu_custom_call.1} parent=1 // pred_region
      %183 = dma.done [#allocation8], 768
    $region89: #{tpu_custom_call.1} parent=1 // pred_fallthru
      _
    // Predicated region
    $region90: #{tpu_custom_call.1} parent=1 // pred_check
      _
    $region91: #{tpu_custom_call.1} parent=1 // pred_check_branch
      %185 = sbr.rel (0) target = $region93
    $region92: #{tpu_custom_call.1} parent=1 // pred_region
      %186 = dma.done [#allocation8], 512
    $region93: #{tpu_custom_call.1} parent=1 // pred_fallthru
      _
    // Predicated region
    $region94: #{tpu_custom_call.1} parent=1 // pred_check
      _
    $region95: #{tpu_custom_call.1} parent=1 // pred_check_branch
      %188 = sbr.rel (0) target = $region97
    $region96: #{tpu_custom_call.1} parent=1 // pred_region
      %189 = dma.done [#allocation11], 512
    $region97: #{tpu_custom_call.1} parent=1 // pred_fallthru
      _
    // Predicated region
    $region98: #{tpu_custom_call.1} parent=1 // pred_check
      _
    $region99: #{tpu_custom_call.1} parent=1 // pred_check_branch
      %191 = sbr.rel (0) target = $region101
    $region100: #{tpu_custom_call.1} parent=1 // pred_region
      %192 = dma.done [#allocation11], 512
    $region101: #{tpu_custom_call.1} parent=1 // pred_fallthru
      _
    // Predicated region
    $region102: #{tpu_custom_call.1} parent=1 // pred_check
      _
    $region103: #{tpu_custom_call.1} parent=1 // pred_check_branch
      %194 = sbr.rel (0) target = $region105
    $region104: #{tpu_custom_call.1} parent=1 // pred_region
      %195 = dma.done [#allocation14], 128
    $region105: #{tpu_custom_call.1} parent=1 // pred_fallthru
      _
    // Predicated region
    $region106: #{tpu_custom_call.1} parent=1 // pred_check
      _
    $region107: #{tpu_custom_call.1} parent=1 // pred_check_branch
      %197 = sbr.rel (0) target = $region109
    $region108: #{tpu_custom_call.1} parent=1 // pred_region
      %198 = dma.done [#allocation14], 128
    $region109: #{tpu_custom_call.1} parent=1 // pred_fallthru
      _
    // Predicated region
    $region110: #{tpu_custom_call.1} parent=1 // pred_check
      _
    $region111: #{tpu_custom_call.1} parent=1 // pred_check_branch
      %200 = sbr.rel (0) target = $region113
    $region112: #{tpu_custom_call.1} parent=1 // pred_region
      %201 = dma.done [#allocation17], 128
    $region113: #{tpu_custom_call.1} parent=1 // pred_fallthru
      _
    // Predicated region
    $region114: #{tpu_custom_call.1} parent=1 // pred_check
      _
    $region115: #{tpu_custom_call.1} parent=1 // pred_check_branch
      %203 = sbr.rel (0) target = $region117
    $region116: #{tpu_custom_call.1} parent=1 // pred_region
      %204 = dma.done [#allocation17], 512
    $region117: #{tpu_custom_call.1} parent=1 // pred_fallthru
      _
    // Predicated region
    $region118: #{tpu_custom_call.1} parent=1 // pred_check
      _
    $region119: #{tpu_custom_call.1} parent=1 // pred_check_branch
      %206 = sbr.rel (0) target = $region121
    $region120: #{tpu_custom_call.1} parent=1 // pred_region
      %207 = dma.done [#allocation20], 512
    $region121: #{tpu_custom_call.1} parent=1 // pred_fallthru
      _
    // Predicated region
    $region122: #{tpu_custom_call.1} parent=1 // pred_check
      _
    $region123: #{tpu_custom_call.1} parent=1 // pred_check_branch
      %209 = sbr.rel (0) target = $region125
    $region124: #{tpu_custom_call.1} parent=1 // pred_region
      %210 = dma.done [#allocation20], 128
    $region125: #{tpu_custom_call.1} parent=1 // pred_fallthru
      _
    // Predicated region
    $region126: #{tpu_custom_call.1} parent=1 // pred_check
      _
    $region127: #{tpu_custom_call.1} parent=1 // pred_check_branch
      %212 = sbr.rel (0) target = $region129
    $region128: #{tpu_custom_call.1} parent=1 // pred_region
      %213 = dma.done [#allocation23], 16384
    $region129: #{tpu_custom_call.1} parent=1 // pred_fallthru
      _
    %214 = sfence
    %s215 = sld [smem:[#allocation2]]
    %s216 = sld [smem:[#allocation2 + $0x1]]
    %s217 = sld [smem:[#allocation2 + $0x2]]
    %s218 = sld [smem:[#allocation2 + $0x3]]
    %v219 = vld [vmem:[#allocation6] sm:$0xff]
    %v220 = vld [vmem:[#allocation6 + $0x8] sm:$0xff]
    %v221 = vadd.f32 %v219, %v220
    %222 = vadd.xlane.f32.xlu0 %v221
    %v223 = vpop.xlane.xlu0 %222
    %v224 = vrcp.pop 256.0
    %v225 = vmul.f32 %v223, %v224
    %v226 = vld [vmem:[#allocation6 + $0x10] sm:$0xff]
    %v227 = vld [vmem:[#allocation6 + $0x18] sm:$0xff]
    %v228 = vadd.f32 %v226, %v227
    %229 = vadd.xlane.f32.xlu0 %v228
    %v230 = vpop.xlane.xlu0 %229
    %v231 = vmul.f32 %v230, %v224
    %v232 = vld [vmem:[#allocation6 + $0x20] sm:$0xff]
    %v233 = vld [vmem:[#allocation6 + $0x28] sm:$0xff]
    %v234 = vadd.f32 %v232, %v233
    %235 = vadd.xlane.f32.xlu0 %v234
    %v236 = vpop.xlane.xlu0 %235
    %v237 = vmul.f32 %v236, %v224
    %v238 = vld [vmem:[#allocation9] ss:$4 sm:$0xff]
    %v240 = vlaneseq
    %v241 = vshrl.u32 %v240, 7
    %v242 = vsub.s32 0, %v241
    %v243 = vrot.slane %v238, %v242
    %v244 = vlaneseq
    %v245 = vshrl.u32 %v244, 7
    %v246 = vsub.s32 1, %v245
    %v247 = vrot.slane %v238, %v246
    %v248 = vlaneseq
    %v249 = vshrl.u32 %v248, 7
    %v250 = vsub.s32 2, %v249
    %v251 = vrot.slane %v238, %v250
    %v252 = vlaneseq
    %v253 = vshrl.u32 %v252, 7
    %v254 = vsub.s32 3, %v253
    %v255 = vrot.slane %v238, %v254
    %v256 = vlaneseq
    %v257 = vshrl.u32 %v256, 7
    %v258 = vsub.s32 4, %v257
    %v259 = vrot.slane %v238, %v258
    %v260 = vlaneseq
    %v261 = vshrl.u32 %v260, 7
    %v262 = vsub.s32 5, %v261
    %v263 = vrot.slane %v238, %v262
    %v264 = vlaneseq
    %v265 = vshrl.u32 %v264, 7
    %v266 = vsub.s32 6, %v265
    %v267 = vrot.slane %v238, %v266
    %v268 = vlaneseq
    %v269 = vshrl.u32 %v268, 7
    %v270 = vsub.s32 7, %v269
    %v271 = vrot.slane %v238, %v270
    %v280 = vmul.f32 %v225, %v243
    %v281 = vmul.f32 %v225, %v247
    %v282 = vmul.f32 %v225, %v251
    %v283 = vmul.f32 %v225, %v255
    %v284 = vmul.f32 %v225, %v259
    %v285 = vmul.f32 %v225, %v263
    %v286 = vmul.f32 %v225, %v267
    %v287 = vmul.f32 %v225, %v271
    %s288 = scalar_lea.vmem [#allocation9], 1
    %v289 = vld [vmem:[%s288] ss:$4 sm:$0xff]
    %v291 = vlaneseq
    %v292 = vshrl.u32 %v291, 7
    %v293 = vsub.s32 0, %v292
    %v294 = vrot.slane %v289, %v293
    %v295 = vlaneseq
    %v296 = vshrl.u32 %v295, 7
    %v297 = vsub.s32 1, %v296
    %v298 = vrot.slane %v289, %v297
    %v299 = vlaneseq
    %v300 = vshrl.u32 %v299, 7
    %v301 = vsub.s32 2, %v300
    %v302 = vrot.slane %v289, %v301
    %v303 = vlaneseq
    %v304 = vshrl.u32 %v303, 7
    %v305 = vsub.s32 3, %v304
    %v306 = vrot.slane %v289, %v305
    %v307 = vlaneseq
    %v308 = vshrl.u32 %v307, 7
    %v309 = vsub.s32 4, %v308
    %v310 = vrot.slane %v289, %v309
    %v311 = vlaneseq
    %v312 = vshrl.u32 %v311, 7
    %v313 = vsub.s32 5, %v312
    %v314 = vrot.slane %v289, %v313
    %v315 = vlaneseq
    %v316 = vshrl.u32 %v315, 7
    %v317 = vsub.s32 6, %v316
    %v318 = vrot.slane %v289, %v317
    %v319 = vlaneseq
    %v320 = vshrl.u32 %v319, 7
    %v321 = vsub.s32 7, %v320
    %v322 = vrot.slane %v289, %v321
    %v331 = vmul.f32 %v231, %v294
    %v332 = vmul.f32 %v231, %v298
    %v333 = vmul.f32 %v231, %v302
    %v334 = vmul.f32 %v231, %v306
    %v335 = vmul.f32 %v231, %v310
    %v336 = vmul.f32 %v231, %v314
    %v337 = vmul.f32 %v231, %v318
    %v338 = vmul.f32 %v231, %v322
    %v339 = vadd.f32 %v280, %v331
    %v340 = vadd.f32 %v281, %v332
    %v341 = vadd.f32 %v282, %v333
    %v342 = vadd.f32 %v283, %v334
    %v343 = vadd.f32 %v284, %v335
    %v344 = vadd.f32 %v285, %v336
    %v345 = vadd.f32 %v286, %v337
    %v346 = vadd.f32 %v287, %v338
    %s347 = scalar_lea.vmem [#allocation9], 2
    %v348 = vld [vmem:[%s347] ss:$4 sm:$0xff]
    %v350 = vlaneseq
    %v351 = vshrl.u32 %v350, 7
    %v352 = vsub.s32 0, %v351
    %v353 = vrot.slane %v348, %v352
    %v354 = vlaneseq
    %v355 = vshrl.u32 %v354, 7
    %v356 = vsub.s32 1, %v355
    %v357 = vrot.slane %v348, %v356
    %v358 = vlaneseq
    %v359 = vshrl.u32 %v358, 7
    %v360 = vsub.s32 2, %v359
    %v361 = vrot.slane %v348, %v360
    %v362 = vlaneseq
    %v363 = vshrl.u32 %v362, 7
    %v364 = vsub.s32 3, %v363
    %v365 = vrot.slane %v348, %v364
    %v366 = vlaneseq
    %v367 = vshrl.u32 %v366, 7
    %v368 = vsub.s32 4, %v367
    %v369 = vrot.slane %v348, %v368
    %v370 = vlaneseq
    %v371 = vshrl.u32 %v370, 7
    %v372 = vsub.s32 5, %v371
    %v373 = vrot.slane %v348, %v372
    %v374 = vlaneseq
    %v375 = vshrl.u32 %v374, 7
    %v376 = vsub.s32 6, %v375
    %v377 = vrot.slane %v348, %v376
    %v378 = vlaneseq
    %v379 = vshrl.u32 %v378, 7
    %v380 = vsub.s32 7, %v379
    %v381 = vrot.slane %v348, %v380
    %v390 = vmul.f32 %v237, %v353
    %v391 = vmul.f32 %v237, %v357
    %v392 = vmul.f32 %v237, %v361
    %v393 = vmul.f32 %v237, %v365
    %v394 = vmul.f32 %v237, %v369
    %v395 = vmul.f32 %v237, %v373
    %v396 = vmul.f32 %v237, %v377
    %v397 = vmul.f32 %v237, %v381
    %v398 = vadd.f32 %v339, %v390
    %v399 = vadd.f32 %v340, %v391
    %v400 = vadd.f32 %v341, %v392
    %v401 = vadd.f32 %v342, %v393
    %v402 = vadd.f32 %v343, %v394
    %v403 = vadd.f32 %v344, %v395
    %v404 = vadd.f32 %v345, %v396
    %v405 = vadd.f32 %v346, %v397
    %v406 = vld [vmem:[#allocation13] sm:$0xff]
    %v408 = vlaneseq
    %v409 = vshrl.u32 %v408, 7
    %v410 = vsub.s32 0, %v409
    %v411 = vrot.slane %v406, %v410
    %v412 = vlaneseq
    %v413 = vshrl.u32 %v412, 7
    %v414 = vsub.s32 1, %v413
    %v415 = vrot.slane %v406, %v414
    %v416 = vlaneseq
    %v417 = vshrl.u32 %v416, 7
    %v418 = vsub.s32 2, %v417
    %v419 = vrot.slane %v406, %v418
    %v420 = vlaneseq
    %v421 = vshrl.u32 %v420, 7
    %v422 = vsub.s32 3, %v421
    %v423 = vrot.slane %v406, %v422
    %v424 = vlaneseq
    %v425 = vshrl.u32 %v424, 7
    %v426 = vsub.s32 4, %v425
    %v427 = vrot.slane %v406, %v426
    %v428 = vlaneseq
    %v429 = vshrl.u32 %v428, 7
    %v430 = vsub.s32 5, %v429
    %v431 = vrot.slane %v406, %v430
    %v432 = vlaneseq
    %v433 = vshrl.u32 %v432, 7
    %v434 = vsub.s32 6, %v433
    %v435 = vrot.slane %v406, %v434
    %v436 = vlaneseq
    %v437 = vshrl.u32 %v436, 7
    %v438 = vsub.s32 7, %v437
    %v439 = vrot.slane %v406, %v438
    %v448 = vadd.f32 %v398, %v411
    %v449 = vadd.f32 %v399, %v415
    %v450 = vadd.f32 %v400, %v419
    %v451 = vadd.f32 %v401, %v423
    %v452 = vadd.f32 %v402, %v427
    %v453 = vadd.f32 %v403, %v431
    %v454 = vadd.f32 %v404, %v435
    %v455 = vadd.f32 %v405, %v439
    %v456 = vmax.f32 %v448, 0.0
    %v457 = vmax.f32 %v449, 0.0
    %v458 = vmax.f32 %v450, 0.0
    %v459 = vmax.f32 %v451, 0.0
    %v460 = vmax.f32 %v452, 0.0
    %v461 = vmax.f32 %v453, 0.0
    %v462 = vmax.f32 %v454, 0.0
    %v463 = vmax.f32 %v455, 0.0
    %v464 = vstv %s215
    %v465 = vmul.f32 %v464, %v456
    %v466 = vmul.f32 %v464, %v457
    %v467 = vmul.f32 %v464, %v458
    %v468 = vmul.f32 %v464, %v459
    %v469 = vmul.f32 %v464, %v460
    %v470 = vmul.f32 %v464, %v461
    %v471 = vmul.f32 %v464, %v462
    %v472 = vmul.f32 %v464, %v463
    %v473 = vld [vmem:[#allocation10] ss:$4 sm:$0xff]
    %v475 = vlaneseq
    %v476 = vshrl.u32 %v475, 7
    %v477 = vsub.s32 0, %v476
    %v478 = vrot.slane %v473, %v477
    %v479 = vlaneseq
    %v480 = vshrl.u32 %v479, 7
    %v481 = vsub.s32 1, %v480
    %v482 = vrot.slane %v473, %v481
    %v483 = vlaneseq
    %v484 = vshrl.u32 %v483, 7
    %v485 = vsub.s32 2, %v484
    %v486 = vrot.slane %v473, %v485
    %v487 = vlaneseq
    %v488 = vshrl.u32 %v487, 7
    %v489 = vsub.s32 3, %v488
    %v490 = vrot.slane %v473, %v489
    %v491 = vlaneseq
    %v492 = vshrl.u32 %v491, 7
    %v493 = vsub.s32 4, %v492
    %v494 = vrot.slane %v473, %v493
    %v495 = vlaneseq
    %v496 = vshrl.u32 %v495, 7
    %v497 = vsub.s32 5, %v496
    %v498 = vrot.slane %v473, %v497
    %v499 = vlaneseq
    %v500 = vshrl.u32 %v499, 7
    %v501 = vsub.s32 6, %v500
    %v502 = vrot.slane %v473, %v501
    %v503 = vlaneseq
    %v504 = vshrl.u32 %v503, 7
    %v505 = vsub.s32 7, %v504
    %v506 = vrot.slane %v473, %v505
    %v515 = vmul.f32 %v225, %v478
    %v516 = vmul.f32 %v225, %v482
    %v517 = vmul.f32 %v225, %v486
    %v518 = vmul.f32 %v225, %v490
    %v519 = vmul.f32 %v225, %v494
    %v520 = vmul.f32 %v225, %v498
    %v521 = vmul.f32 %v225, %v502
    %v522 = vmul.f32 %v225, %v506
    %s523 = scalar_lea.vmem [#allocation10], 1
    %v524 = vld [vmem:[%s523] ss:$4 sm:$0xff]
    %v526 = vlaneseq
    %v527 = vshrl.u32 %v526, 7
    %v528 = vsub.s32 0, %v527
    %v529 = vrot.slane %v524, %v528
    %v530 = vlaneseq
    %v531 = vshrl.u32 %v530, 7
    %v532 = vsub.s32 1, %v531
    %v533 = vrot.slane %v524, %v532
    %v534 = vlaneseq
    %v535 = vshrl.u32 %v534, 7
    %v536 = vsub.s32 2, %v535
    %v537 = vrot.slane %v524, %v536
    %v538 = vlaneseq
    %v539 = vshrl.u32 %v538, 7
    %v540 = vsub.s32 3, %v539
    %v541 = vrot.slane %v524, %v540
    %v542 = vlaneseq
    %v543 = vshrl.u32 %v542, 7
    %v544 = vsub.s32 4, %v543
    %v545 = vrot.slane %v524, %v544
    %v546 = vlaneseq
    %v547 = vshrl.u32 %v546, 7
    %v548 = vsub.s32 5, %v547
    %v549 = vrot.slane %v524, %v548
    %v550 = vlaneseq
    %v551 = vshrl.u32 %v550, 7
    %v552 = vsub.s32 6, %v551
    %v553 = vrot.slane %v524, %v552
    %v554 = vlaneseq
    %v555 = vshrl.u32 %v554, 7
    %v556 = vsub.s32 7, %v555
    %v557 = vrot.slane %v524, %v556
    %v566 = vmul.f32 %v231, %v529
    %v567 = vmul.f32 %v231, %v533
    %v568 = vmul.f32 %v231, %v537
    %v569 = vmul.f32 %v231, %v541
    %v570 = vmul.f32 %v231, %v545
    %v571 = vmul.f32 %v231, %v549
    %v572 = vmul.f32 %v231, %v553
    %v573 = vmul.f32 %v231, %v557
    %v574 = vadd.f32 %v515, %v566
    %v575 = vadd.f32 %v516, %v567
    %v576 = vadd.f32 %v517, %v568
    %v577 = vadd.f32 %v518, %v569
    %v578 = vadd.f32 %v519, %v570
    %v579 = vadd.f32 %v520, %v571
    %v580 = vadd.f32 %v521, %v572
    %v581 = vadd.f32 %v522, %v573
    %s582 = scalar_lea.vmem [#allocation10], 2
    %v583 = vld [vmem:[%s582] ss:$4 sm:$0xff]
    %v585 = vlaneseq
    %v586 = vshrl.u32 %v585, 7
    %v587 = vsub.s32 0, %v586
    %v588 = vrot.slane %v583, %v587
    %v589 = vlaneseq
    %v590 = vshrl.u32 %v589, 7
    %v591 = vsub.s32 1, %v590
    %v592 = vrot.slane %v583, %v591
    %v593 = vlaneseq
    %v594 = vshrl.u32 %v593, 7
    %v595 = vsub.s32 2, %v594
    %v596 = vrot.slane %v583, %v595
    %v597 = vlaneseq
    %v598 = vshrl.u32 %v597, 7
    %v599 = vsub.s32 3, %v598
    %v600 = vrot.slane %v583, %v599
    %v601 = vlaneseq
    %v602 = vshrl.u32 %v601, 7
    %v603 = vsub.s32 4, %v602
    %v604 = vrot.slane %v583, %v603
    %v605 = vlaneseq
    %v606 = vshrl.u32 %v605, 7
    %v607 = vsub.s32 5, %v606
    %v608 = vrot.slane %v583, %v607
    %v609 = vlaneseq
    %v610 = vshrl.u32 %v609, 7
    %v611 = vsub.s32 6, %v610
    %v612 = vrot.slane %v583, %v611
    %v613 = vlaneseq
    %v614 = vshrl.u32 %v613, 7
    %v615 = vsub.s32 7, %v614
    %v616 = vrot.slane %v583, %v615
    %v625 = vmul.f32 %v237, %v588
    %v626 = vmul.f32 %v237, %v592
    %v627 = vmul.f32 %v237, %v596
    %v628 = vmul.f32 %v237, %v600
    %v629 = vmul.f32 %v237, %v604
    %v630 = vmul.f32 %v237, %v608
    %v631 = vmul.f32 %v237, %v612
    %v632 = vmul.f32 %v237, %v616
    %v633 = vadd.f32 %v574, %v625
    %v634 = vadd.f32 %v575, %v626
    %v635 = vadd.f32 %v576, %v627
    %v636 = vadd.f32 %v577, %v628
    %v637 = vadd.f32 %v578, %v629
    %v638 = vadd.f32 %v579, %v630
    %v639 = vadd.f32 %v580, %v631
    %v640 = vadd.f32 %v581, %v632
    %v641 = vld [vmem:[#allocation15] sm:$0xff]
    %v643 = vlaneseq
    %v644 = vshrl.u32 %v643, 7
    %v645 = vsub.s32 0, %v644
    %v646 = vrot.slane %v641, %v645
    %v647 = vlaneseq
    %v648 = vshrl.u32 %v647, 7
    %v649 = vsub.s32 1, %v648
    %v650 = vrot.slane %v641, %v649
    %v651 = vlaneseq
    %v652 = vshrl.u32 %v651, 7
    %v653 = vsub.s32 2, %v652
    %v654 = vrot.slane %v641, %v653
    %v655 = vlaneseq
    %v656 = vshrl.u32 %v655, 7
    %v657 = vsub.s32 3, %v656
    %v658 = vrot.slane %v641, %v657
    %v659 = vlaneseq
    %v660 = vshrl.u32 %v659, 7
    %v661 = vsub.s32 4, %v660
    %v662 = vrot.slane %v641, %v661
    %v663 = vlaneseq
    %v664 = vshrl.u32 %v663, 7
    %v665 = vsub.s32 5, %v664
    %v666 = vrot.slane %v641, %v665
    %v667 = vlaneseq
    %v668 = vshrl.u32 %v667, 7
    %v669 = vsub.s32 6, %v668
    %v670 = vrot.slane %v641, %v669
    %v671 = vlaneseq
    %v672 = vshrl.u32 %v671, 7
    %v673 = vsub.s32 7, %v672
    %v674 = vrot.slane %v641, %v673
    %v683 = vadd.f32 %v633, %v646
    %v684 = vadd.f32 %v634, %v650
    %v685 = vadd.f32 %v635, %v654
    %v686 = vadd.f32 %v636, %v658
    %v687 = vadd.f32 %v637, %v662
    %v688 = vadd.f32 %v638, %v666
    %v689 = vadd.f32 %v639, %v670
    %v690 = vadd.f32 %v640, %v674
    %v691 = vmax.f32 %v683, 0.0
    %v692 = vmax.f32 %v684, 0.0
    %v693 = vmax.f32 %v685, 0.0
    %v694 = vmax.f32 %v686, 0.0
    %v695 = vmax.f32 %v687, 0.0
    %v696 = vmax.f32 %v688, 0.0
    %v697 = vmax.f32 %v689, 0.0
    %v698 = vmax.f32 %v690, 0.0
    %v699 = vstv %s216
    %v700 = vmul.f32 %v699, %v691
    %v701 = vmul.f32 %v699, %v692
    %v702 = vmul.f32 %v699, %v693
    %v703 = vmul.f32 %v699, %v694
    %v704 = vmul.f32 %v699, %v695
    %v705 = vmul.f32 %v699, %v696
    %v706 = vmul.f32 %v699, %v697
    %v707 = vmul.f32 %v699, %v698
    %v708 = vadd.f32 %v465, %v700
    %v709 = vadd.f32 %v466, %v701
    %v710 = vadd.f32 %v467, %v702
    %v711 = vadd.f32 %v468, %v703
    %v712 = vadd.f32 %v469, %v704
    %v713 = vadd.f32 %v470, %v705
    %v714 = vadd.f32 %v471, %v706
    %v715 = vadd.f32 %v472, %v707
    %v716 = vld [vmem:[#allocation12] ss:$4 sm:$0xff]
    %v718 = vlaneseq
    %v719 = vshrl.u32 %v718, 7
    %v720 = vsub.s32 0, %v719
    %v721 = vrot.slane %v716, %v720
    %v722 = vlaneseq
    %v723 = vshrl.u32 %v722, 7
    %v724 = vsub.s32 1, %v723
    %v725 = vrot.slane %v716, %v724
    %v726 = vlaneseq
    %v727 = vshrl.u32 %v726, 7
    %v728 = vsub.s32 2, %v727
    %v729 = vrot.slane %v716, %v728
    %v730 = vlaneseq
    %v731 = vshrl.u32 %v730, 7
    %v732 = vsub.s32 3, %v731
    %v733 = vrot.slane %v716, %v732
    %v734 = vlaneseq
    %v735 = vshrl.u32 %v734, 7
    %v736 = vsub.s32 4, %v735
    %v737 = vrot.slane %v716, %v736
    %v738 = vlaneseq
    %v739 = vshrl.u32 %v738, 7
    %v740 = vsub.s32 5, %v739
    %v741 = vrot.slane %v716, %v740
    %v742 = vlaneseq
    %v743 = vshrl.u32 %v742, 7
    %v744 = vsub.s32 6, %v743
    %v745 = vrot.slane %v716, %v744
    %v746 = vlaneseq
    %v747 = vshrl.u32 %v746, 7
    %v748 = vsub.s32 7, %v747
    %v749 = vrot.slane %v716, %v748
    %v758 = vmul.f32 %v225, %v721
    %v759 = vmul.f32 %v225, %v725
    %v760 = vmul.f32 %v225, %v729
    %v761 = vmul.f32 %v225, %v733
    %v762 = vmul.f32 %v225, %v737
    %v763 = vmul.f32 %v225, %v741
    %v764 = vmul.f32 %v225, %v745
    %v765 = vmul.f32 %v225, %v749
    %s766 = scalar_lea.vmem [#allocation12], 1
    %v767 = vld [vmem:[%s766] ss:$4 sm:$0xff]
    %v769 = vlaneseq
    %v770 = vshrl.u32 %v769, 7
    %v771 = vsub.s32 0, %v770
    %v772 = vrot.slane %v767, %v771
    %v773 = vlaneseq
    %v774 = vshrl.u32 %v773, 7
    %v775 = vsub.s32 1, %v774
    %v776 = vrot.slane %v767, %v775
    %v777 = vlaneseq
    %v778 = vshrl.u32 %v777, 7
    %v779 = vsub.s32 2, %v778
    %v780 = vrot.slane %v767, %v779
    %v781 = vlaneseq
    %v782 = vshrl.u32 %v781, 7
    %v783 = vsub.s32 3, %v782
    %v784 = vrot.slane %v767, %v783
    %v785 = vlaneseq
    %v786 = vshrl.u32 %v785, 7
    %v787 = vsub.s32 4, %v786
    %v788 = vrot.slane %v767, %v787
    %v789 = vlaneseq
    %v790 = vshrl.u32 %v789, 7
    %v791 = vsub.s32 5, %v790
    %v792 = vrot.slane %v767, %v791
    %v793 = vlaneseq
    %v794 = vshrl.u32 %v793, 7
    %v795 = vsub.s32 6, %v794
    %v796 = vrot.slane %v767, %v795
    %v797 = vlaneseq
    %v798 = vshrl.u32 %v797, 7
    %v799 = vsub.s32 7, %v798
    %v800 = vrot.slane %v767, %v799
    %v809 = vmul.f32 %v231, %v772
    %v810 = vmul.f32 %v231, %v776
    %v811 = vmul.f32 %v231, %v780
    %v812 = vmul.f32 %v231, %v784
    %v813 = vmul.f32 %v231, %v788
    %v814 = vmul.f32 %v231, %v792
    %v815 = vmul.f32 %v231, %v796
    %v816 = vmul.f32 %v231, %v800
    %v817 = vadd.f32 %v758, %v809
    %v818 = vadd.f32 %v759, %v810
    %v819 = vadd.f32 %v760, %v811
    %v820 = vadd.f32 %v761, %v812
    %v821 = vadd.f32 %v762, %v813
    %v822 = vadd.f32 %v763, %v814
    %v823 = vadd.f32 %v764, %v815
    %v824 = vadd.f32 %v765, %v816
    %s825 = scalar_lea.vmem [#allocation12], 2
    %v826 = vld [vmem:[%s825] ss:$4 sm:$0xff]
    %v828 = vlaneseq
    %v829 = vshrl.u32 %v828, 7
    %v830 = vsub.s32 0, %v829
    %v831 = vrot.slane %v826, %v830
    %v832 = vlaneseq
    %v833 = vshrl.u32 %v832, 7
    %v834 = vsub.s32 1, %v833
    %v835 = vrot.slane %v826, %v834
    %v836 = vlaneseq
    %v837 = vshrl.u32 %v836, 7
    %v838 = vsub.s32 2, %v837
    %v839 = vrot.slane %v826, %v838
    %v840 = vlaneseq
    %v841 = vshrl.u32 %v840, 7
    %v842 = vsub.s32 3, %v841
    %v843 = vrot.slane %v826, %v842
    %v844 = vlaneseq
    %v845 = vshrl.u32 %v844, 7
    %v846 = vsub.s32 4, %v845
    %v847 = vrot.slane %v826, %v846
    %v848 = vlaneseq
    %v849 = vshrl.u32 %v848, 7
    %v850 = vsub.s32 5, %v849
    %v851 = vrot.slane %v826, %v850
    %v852 = vlaneseq
    %v853 = vshrl.u32 %v852, 7
    %v854 = vsub.s32 6, %v853
    %v855 = vrot.slane %v826, %v854
    %v856 = vlaneseq
    %v857 = vshrl.u32 %v856, 7
    %v858 = vsub.s32 7, %v857
    %v859 = vrot.slane %v826, %v858
    %v868 = vmul.f32 %v237, %v831
    %v869 = vmul.f32 %v237, %v835
    %v870 = vmul.f32 %v237, %v839
    %v871 = vmul.f32 %v237, %v843
    %v872 = vmul.f32 %v237, %v847
    %v873 = vmul.f32 %v237, %v851
    %v874 = vmul.f32 %v237, %v855
    %v875 = vmul.f32 %v237, %v859
    %v876 = vadd.f32 %v817, %v868
    %v877 = vadd.f32 %v818, %v869
    %v878 = vadd.f32 %v819, %v870
    %v879 = vadd.f32 %v820, %v871
    %v880 = vadd.f32 %v821, %v872
    %v881 = vadd.f32 %v822, %v873
    %v882 = vadd.f32 %v823, %v874
    %v883 = vadd.f32 %v824, %v875
    %v884 = vld [vmem:[#allocation16] sm:$0xff]
    %v886 = vlaneseq
    %v887 = vshrl.u32 %v886, 7
    %v888 = vsub.s32 0, %v887
    %v889 = vrot.slane %v884, %v888
    %v890 = vlaneseq
    %v891 = vshrl.u32 %v890, 7
    %v892 = vsub.s32 1, %v891
    %v893 = vrot.slane %v884, %v892
    %v894 = vlaneseq
    %v895 = vshrl.u32 %v894, 7
    %v896 = vsub.s32 2, %v895
    %v897 = vrot.slane %v884, %v896
    %v898 = vlaneseq
    %v899 = vshrl.u32 %v898, 7
    %v900 = vsub.s32 3, %v899
    %v901 = vrot.slane %v884, %v900
    %v902 = vlaneseq
    %v903 = vshrl.u32 %v902, 7
    %v904 = vsub.s32 4, %v903
    %v905 = vrot.slane %v884, %v904
    %v906 = vlaneseq
    %v907 = vshrl.u32 %v906, 7
    %v908 = vsub.s32 5, %v907
    %v909 = vrot.slane %v884, %v908
    %v910 = vlaneseq
    %v911 = vshrl.u32 %v910, 7
    %v912 = vsub.s32 6, %v911
    %v913 = vrot.slane %v884, %v912
    %v914 = vlaneseq
    %v915 = vshrl.u32 %v914, 7
    %v916 = vsub.s32 7, %v915
    %v917 = vrot.slane %v884, %v916
    %v926 = vadd.f32 %v876, %v889
    %v927 = vadd.f32 %v877, %v893
    %v928 = vadd.f32 %v878, %v897
    %v929 = vadd.f32 %v879, %v901
    %v930 = vadd.f32 %v880, %v905
    %v931 = vadd.f32 %v881, %v909
    %v932 = vadd.f32 %v882, %v913
    %v933 = vadd.f32 %v883, %v917
    %v934 = vmax.f32 %v926, 0.0
    %v935 = vmax.f32 %v927, 0.0
    %v936 = vmax.f32 %v928, 0.0
    %v937 = vmax.f32 %v929, 0.0
    %v938 = vmax.f32 %v930, 0.0
    %v939 = vmax.f32 %v931, 0.0
    %v940 = vmax.f32 %v932, 0.0
    %v941 = vmax.f32 %v933, 0.0
    %v942 = vstv %s217
    %v943 = vmul.f32 %v942, %v934
    %v944 = vmul.f32 %v942, %v935
    %v945 = vmul.f32 %v942, %v936
    %v946 = vmul.f32 %v942, %v937
    %v947 = vmul.f32 %v942, %v938
    %v948 = vmul.f32 %v942, %v939
    %v949 = vmul.f32 %v942, %v940
    %v950 = vmul.f32 %v942, %v941
    %v951 = vadd.f32 %v708, %v943
    %v952 = vadd.f32 %v709, %v944
    %v953 = vadd.f32 %v710, %v945
    %v954 = vadd.f32 %v711, %v946
    %v955 = vadd.f32 %v712, %v947
    %v956 = vadd.f32 %v713, %v948
    %v957 = vadd.f32 %v714, %v949
    %v958 = vadd.f32 %v715, %v950
    %v959 = vstv %s218
    %v960 = vadd.f32 %v951, %v959
    %v961 = vadd.f32 %v952, %v959
    %v962 = vadd.f32 %v953, %v959
    %v963 = vadd.f32 %v954, %v959
    %v964 = vadd.f32 %v955, %v959
    %v965 = vadd.f32 %v956, %v959
    %v966 = vadd.f32 %v957, %v959
    %v967 = vadd.f32 %v958, %v959
    %v968 = vmax.f32 %v960, 0.0
    %v969 = vmax.f32 %v961, 0.0
    %v970 = vmax.f32 %v962, 0.0
    %v971 = vmax.f32 %v963, 0.0
    %v972 = vmax.f32 %v964, 0.0
    %v973 = vmax.f32 %v965, 0.0
    %v974 = vmax.f32 %v966, 0.0
    %v975 = vmax.f32 %v967, 0.0
    %s976 = sld [smem:[#allocation2 + $0x4]]
    %s977 = sld [smem:[#allocation2 + $0x5]]
    %s978 = sld [smem:[#allocation2 + $0x6]]
    %s979 = sld [smem:[#allocation2 + $0x7]]
    %v980 = vld [vmem:[#allocation7] sm:$0xff]
    %v981 = vld [vmem:[#allocation7 + $0x8] sm:$0xff]
    %v982 = vadd.f32 %v980, %v981
    %983 = vadd.xlane.f32.xlu0 %v982
    %v984 = vpop.xlane.xlu0 %983
    %v985 = vmul.f32 %v984, %v224
    %v986 = vld [vmem:[#allocation7 + $0x10] sm:$0xff]
    %v987 = vld [vmem:[#allocation7 + $0x18] sm:$0xff]
    %v988 = vadd.f32 %v986, %v987
    %989 = vadd.xlane.f32.xlu0 %v988
    %v990 = vpop.xlane.xlu0 %989
    %v991 = vmul.f32 %v990, %v224
    %v992 = vld [vmem:[#allocation7 + $0x20] sm:$0xff]
    %v993 = vld [vmem:[#allocation7 + $0x28] sm:$0xff]
    %v994 = vadd.f32 %v992, %v993
    %995 = vadd.xlane.f32.xlu0 %v994
    %v996 = vpop.xlane.xlu0 %995
    %v997 = vmul.f32 %v996, %v224
    %v998 = vld [vmem:[%s9] ss:$4 sm:$0xff]
    %v1000 = vlaneseq
    %v1001 = vshrl.u32 %v1000, 7
    %v1002 = vsub.s32 0, %v1001
    %v1003 = vrot.slane %v998, %v1002
    %v1004 = vlaneseq
    %v1005 = vshrl.u32 %v1004, 7
    %v1006 = vsub.s32 1, %v1005
    %v1007 = vrot.slane %v998, %v1006
    %v1008 = vlaneseq
    %v1009 = vshrl.u32 %v1008, 7
    %v1010 = vsub.s32 2, %v1009
    %v1011 = vrot.slane %v998, %v1010
    %v1012 = vlaneseq
    %v1013 = vshrl.u32 %v1012, 7
    %v1014 = vsub.s32 3, %v1013
    %v1015 = vrot.slane %v998, %v1014
    %v1016 = vlaneseq
    %v1017 = vshrl.u32 %v1016, 7
    %v1018 = vsub.s32 4, %v1017
    %v1019 = vrot.slane %v998, %v1018
    %v1020 = vlaneseq
    %v1021 = vshrl.u32 %v1020, 7
    %v1022 = vsub.s32 5, %v1021
    %v1023 = vrot.slane %v998, %v1022
    %v1024 = vlaneseq
    %v1025 = vshrl.u32 %v1024, 7
    %v1026 = vsub.s32 6, %v1025
    %v1027 = vrot.slane %v998, %v1026
    %v1028 = vlaneseq
    %v1029 = vshrl.u32 %v1028, 7
    %v1030 = vsub.s32 7, %v1029
    %v1031 = vrot.slane %v998, %v1030
    %v1040 = vmul.f32 %v985, %v1003
    %v1041 = vmul.f32 %v985, %v1007
    %v1042 = vmul.f32 %v985, %v1011
    %v1043 = vmul.f32 %v985, %v1015
    %v1044 = vmul.f32 %v985, %v1019
    %v1045 = vmul.f32 %v985, %v1023
    %v1046 = vmul.f32 %v985, %v1027
    %v1047 = vmul.f32 %v985, %v1031
    %s1048 = scalar_lea.vmem %s9, 1
    %v1049 = vld [vmem:[%s1048] ss:$4 sm:$0xff]
    %v1051 = vlaneseq
    %v1052 = vshrl.u32 %v1051, 7
    %v1053 = vsub.s32 0, %v1052
    %v1054 = vrot.slane %v1049, %v1053
    %v1055 = vlaneseq
    %v1056 = vshrl.u32 %v1055, 7
    %v1057 = vsub.s32 1, %v1056
    %v1058 = vrot.slane %v1049, %v1057
    %v1059 = vlaneseq
    %v1060 = vshrl.u32 %v1059, 7
    %v1061 = vsub.s32 2, %v1060
    %v1062 = vrot.slane %v1049, %v1061
    %v1063 = vlaneseq
    %v1064 = vshrl.u32 %v1063, 7
    %v1065 = vsub.s32 3, %v1064
    %v1066 = vrot.slane %v1049, %v1065
    %v1067 = vlaneseq
    %v1068 = vshrl.u32 %v1067, 7
    %v1069 = vsub.s32 4, %v1068
    %v1070 = vrot.slane %v1049, %v1069
    %v1071 = vlaneseq
    %v1072 = vshrl.u32 %v1071, 7
    %v1073 = vsub.s32 5, %v1072
    %v1074 = vrot.slane %v1049, %v1073
    %v1075 = vlaneseq
    %v1076 = vshrl.u32 %v1075, 7
    %v1077 = vsub.s32 6, %v1076
    %v1078 = vrot.slane %v1049, %v1077
    %v1079 = vlaneseq
    %v1080 = vshrl.u32 %v1079, 7
    %v1081 = vsub.s32 7, %v1080
    %v1082 = vrot.slane %v1049, %v1081
    %v1091 = vmul.f32 %v991, %v1054
    %v1092 = vmul.f32 %v991, %v1058
    %v1093 = vmul.f32 %v991, %v1062
    %v1094 = vmul.f32 %v991, %v1066
    %v1095 = vmul.f32 %v991, %v1070
    %v1096 = vmul.f32 %v991, %v1074
    %v1097 = vmul.f32 %v991, %v1078
    %v1098 = vmul.f32 %v991, %v1082
    %v1099 = vadd.f32 %v1040, %v1091
    %v1100 = vadd.f32 %v1041, %v1092
    %v1101 = vadd.f32 %v1042, %v1093
    %v1102 = vadd.f32 %v1043, %v1094
    %v1103 = vadd.f32 %v1044, %v1095
    %v1104 = vadd.f32 %v1045, %v1096
    %v1105 = vadd.f32 %v1046, %v1097
    %v1106 = vadd.f32 %v1047, %v1098
    %s1107 = scalar_lea.vmem %s9, 2
    %v1108 = vld [vmem:[%s1107] ss:$4 sm:$0xff]
    %v1110 = vlaneseq
    %v1111 = vshrl.u32 %v1110, 7
    %v1112 = vsub.s32 0, %v1111
    %v1113 = vrot.slane %v1108, %v1112
    %v1114 = vlaneseq
    %v1115 = vshrl.u32 %v1114, 7
    %v1116 = vsub.s32 1, %v1115
    %v1117 = vrot.slane %v1108, %v1116
    %v1118 = vlaneseq
    %v1119 = vshrl.u32 %v1118, 7
    %v1120 = vsub.s32 2, %v1119
    %v1121 = vrot.slane %v1108, %v1120
    %v1122 = vlaneseq
    %v1123 = vshrl.u32 %v1122, 7
    %v1124 = vsub.s32 3, %v1123
    %v1125 = vrot.slane %v1108, %v1124
    %v1126 = vlaneseq
    %v1127 = vshrl.u32 %v1126, 7
    %v1128 = vsub.s32 4, %v1127
    %v1129 = vrot.slane %v1108, %v1128
    %v1130 = vlaneseq
    %v1131 = vshrl.u32 %v1130, 7
    %v1132 = vsub.s32 5, %v1131
    %v1133 = vrot.slane %v1108, %v1132
    %v1134 = vlaneseq
    %v1135 = vshrl.u32 %v1134, 7
    %v1136 = vsub.s32 6, %v1135
    %v1137 = vrot.slane %v1108, %v1136
    %v1138 = vlaneseq
    %v1139 = vshrl.u32 %v1138, 7
    %v1140 = vsub.s32 7, %v1139
    %v1141 = vrot.slane %v1108, %v1140
    %v1150 = vmul.f32 %v997, %v1113
    %v1151 = vmul.f32 %v997, %v1117
    %v1152 = vmul.f32 %v997, %v1121
    %v1153 = vmul.f32 %v997, %v1125
    %v1154 = vmul.f32 %v997, %v1129
    %v1155 = vmul.f32 %v997, %v1133
    %v1156 = vmul.f32 %v997, %v1137
    %v1157 = vmul.f32 %v997, %v1141
    %v1158 = vadd.f32 %v1099, %v1150
    %v1159 = vadd.f32 %v1100, %v1151
    %v1160 = vadd.f32 %v1101, %v1152
    %v1161 = vadd.f32 %v1102, %v1153
    %v1162 = vadd.f32 %v1103, %v1154
    %v1163 = vadd.f32 %v1104, %v1155
    %v1164 = vadd.f32 %v1105, %v1156
    %v1165 = vadd.f32 %v1106, %v1157
    %v1166 = vld [vmem:[%s12] sm:$0xff]
    %v1168 = vlaneseq
    %v1169 = vshrl.u32 %v1168, 7
    %v1170 = vsub.s32 0, %v1169
    %v1171 = vrot.slane %v1166, %v1170
    %v1172 = vlaneseq
    %v1173 = vshrl.u32 %v1172, 7
    %v1174 = vsub.s32 1, %v1173
    %v1175 = vrot.slane %v1166, %v1174
    %v1176 = vlaneseq
    %v1177 = vshrl.u32 %v1176, 7
    %v1178 = vsub.s32 2, %v1177
    %v1179 = vrot.slane %v1166, %v1178
    %v1180 = vlaneseq
    %v1181 = vshrl.u32 %v1180, 7
    %v1182 = vsub.s32 3, %v1181
    %v1183 = vrot.slane %v1166, %v1182
    %v1184 = vlaneseq
    %v1185 = vshrl.u32 %v1184, 7
    %v1186 = vsub.s32 4, %v1185
    %v1187 = vrot.slane %v1166, %v1186
    %v1188 = vlaneseq
    %v1189 = vshrl.u32 %v1188, 7
    %v1190 = vsub.s32 5, %v1189
    %v1191 = vrot.slane %v1166, %v1190
    %v1192 = vlaneseq
    %v1193 = vshrl.u32 %v1192, 7
    %v1194 = vsub.s32 6, %v1193
    %v1195 = vrot.slane %v1166, %v1194
    %v1196 = vlaneseq
    %v1197 = vshrl.u32 %v1196, 7
    %v1198 = vsub.s32 7, %v1197
    %v1199 = vrot.slane %v1166, %v1198
    %v1208 = vadd.f32 %v1158, %v1171
    %v1209 = vadd.f32 %v1159, %v1175
    %v1210 = vadd.f32 %v1160, %v1179
    %v1211 = vadd.f32 %v1161, %v1183
    %v1212 = vadd.f32 %v1162, %v1187
    %v1213 = vadd.f32 %v1163, %v1191
    %v1214 = vadd.f32 %v1164, %v1195
    %v1215 = vadd.f32 %v1165, %v1199
    %v1216 = vmax.f32 %v1208, 0.0
    %v1217 = vmax.f32 %v1209, 0.0
    %v1218 = vmax.f32 %v1210, 0.0
    %v1219 = vmax.f32 %v1211, 0.0
    %v1220 = vmax.f32 %v1212, 0.0
    %v1221 = vmax.f32 %v1213, 0.0
    %v1222 = vmax.f32 %v1214, 0.0
    %v1223 = vmax.f32 %v1215, 0.0
    %v1224 = vstv %s976
    %v1225 = vmul.f32 %v1224, %v1216
    %v1226 = vmul.f32 %v1224, %v1217
    %v1227 = vmul.f32 %v1224, %v1218
    %v1228 = vmul.f32 %v1224, %v1219
    %v1229 = vmul.f32 %v1224, %v1220
    %v1230 = vmul.f32 %v1224, %v1221
    %v1231 = vmul.f32 %v1224, %v1222
    %v1232 = vmul.f32 %v1224, %v1223
    %v1233 = vld [vmem:[#allocation18] ss:$4 sm:$0xff]
    %v1235 = vlaneseq
    %v1236 = vshrl.u32 %v1235, 7
    %v1237 = vsub.s32 0, %v1236
    %v1238 = vrot.slane %v1233, %v1237
    %v1239 = vlaneseq
    %v1240 = vshrl.u32 %v1239, 7
    %v1241 = vsub.s32 1, %v1240
    %v1242 = vrot.slane %v1233, %v1241
    %v1243 = vlaneseq
    %v1244 = vshrl.u32 %v1243, 7
    %v1245 = vsub.s32 2, %v1244
    %v1246 = vrot.slane %v1233, %v1245
    %v1247 = vlaneseq
    %v1248 = vshrl.u32 %v1247, 7
    %v1249 = vsub.s32 3, %v1248
    %v1250 = vrot.slane %v1233, %v1249
    %v1251 = vlaneseq
    %v1252 = vshrl.u32 %v1251, 7
    %v1253 = vsub.s32 4, %v1252
    %v1254 = vrot.slane %v1233, %v1253
    %v1255 = vlaneseq
    %v1256 = vshrl.u32 %v1255, 7
    %v1257 = vsub.s32 5, %v1256
    %v1258 = vrot.slane %v1233, %v1257
    %v1259 = vlaneseq
    %v1260 = vshrl.u32 %v1259, 7
    %v1261 = vsub.s32 6, %v1260
    %v1262 = vrot.slane %v1233, %v1261
    %v1263 = vlaneseq
    %v1264 = vshrl.u32 %v1263, 7
    %v1265 = vsub.s32 7, %v1264
    %v1266 = vrot.slane %v1233, %v1265
    %v1275 = vmul.f32 %v985, %v1238
    %v1276 = vmul.f32 %v985, %v1242
    %v1277 = vmul.f32 %v985, %v1246
    %v1278 = vmul.f32 %v985, %v1250
    %v1279 = vmul.f32 %v985, %v1254
    %v1280 = vmul.f32 %v985, %v1258
    %v1281 = vmul.f32 %v985, %v1262
    %v1282 = vmul.f32 %v985, %v1266
    %s1283 = scalar_lea.vmem [#allocation18], 1
    %v1284 = vld [vmem:[%s1283] ss:$4 sm:$0xff]
    %v1286 = vlaneseq
    %v1287 = vshrl.u32 %v1286, 7
    %v1288 = vsub.s32 0, %v1287
    %v1289 = vrot.slane %v1284, %v1288
    %v1290 = vlaneseq
    %v1291 = vshrl.u32 %v1290, 7
    %v1292 = vsub.s32 1, %v1291
    %v1293 = vrot.slane %v1284, %v1292
    %v1294 = vlaneseq
    %v1295 = vshrl.u32 %v1294, 7
    %v1296 = vsub.s32 2, %v1295
    %v1297 = vrot.slane %v1284, %v1296
    %v1298 = vlaneseq
    %v1299 = vshrl.u32 %v1298, 7
    %v1300 = vsub.s32 3, %v1299
    %v1301 = vrot.slane %v1284, %v1300
    %v1302 = vlaneseq
    %v1303 = vshrl.u32 %v1302, 7
    %v1304 = vsub.s32 4, %v1303
    %v1305 = vrot.slane %v1284, %v1304
    %v1306 = vlaneseq
    %v1307 = vshrl.u32 %v1306, 7
    %v1308 = vsub.s32 5, %v1307
    %v1309 = vrot.slane %v1284, %v1308
    %v1310 = vlaneseq
    %v1311 = vshrl.u32 %v1310, 7
    %v1312 = vsub.s32 6, %v1311
    %v1313 = vrot.slane %v1284, %v1312
    %v1314 = vlaneseq
    %v1315 = vshrl.u32 %v1314, 7
    %v1316 = vsub.s32 7, %v1315
    %v1317 = vrot.slane %v1284, %v1316
    %v1326 = vmul.f32 %v991, %v1289
    %v1327 = vmul.f32 %v991, %v1293
    %v1328 = vmul.f32 %v991, %v1297
    %v1329 = vmul.f32 %v991, %v1301
    %v1330 = vmul.f32 %v991, %v1305
    %v1331 = vmul.f32 %v991, %v1309
    %v1332 = vmul.f32 %v991, %v1313
    %v1333 = vmul.f32 %v991, %v1317
    %v1334 = vadd.f32 %v1275, %v1326
    %v1335 = vadd.f32 %v1276, %v1327
    %v1336 = vadd.f32 %v1277, %v1328
    %v1337 = vadd.f32 %v1278, %v1329
    %v1338 = vadd.f32 %v1279, %v1330
    %v1339 = vadd.f32 %v1280, %v1331
    %v1340 = vadd.f32 %v1281, %v1332
    %v1341 = vadd.f32 %v1282, %v1333
    %s1342 = scalar_lea.vmem [#allocation18], 2
    %v1343 = vld [vmem:[%s1342] ss:$4 sm:$0xff]
    %v1345 = vlaneseq
    %v1346 = vshrl.u32 %v1345, 7
    %v1347 = vsub.s32 0, %v1346
    %v1348 = vrot.slane %v1343, %v1347
    %v1349 = vlaneseq
    %v1350 = vshrl.u32 %v1349, 7
    %v1351 = vsub.s32 1, %v1350
    %v1352 = vrot.slane %v1343, %v1351
    %v1353 = vlaneseq
    %v1354 = vshrl.u32 %v1353, 7
    %v1355 = vsub.s32 2, %v1354
    %v1356 = vrot.slane %v1343, %v1355
    %v1357 = vlaneseq
    %v1358 = vshrl.u32 %v1357, 7
    %v1359 = vsub.s32 3, %v1358
    %v1360 = vrot.slane %v1343, %v1359
    %v1361 = vlaneseq
    %v1362 = vshrl.u32 %v1361, 7
    %v1363 = vsub.s32 4, %v1362
    %v1364 = vrot.slane %v1343, %v1363
    %v1365 = vlaneseq
    %v1366 = vshrl.u32 %v1365, 7
    %v1367 = vsub.s32 5, %v1366
    %v1368 = vrot.slane %v1343, %v1367
    %v1369 = vlaneseq
    %v1370 = vshrl.u32 %v1369, 7
    %v1371 = vsub.s32 6, %v1370
    %v1372 = vrot.slane %v1343, %v1371
    %v1373 = vlaneseq
    %v1374 = vshrl.u32 %v1373, 7
    %v1375 = vsub.s32 7, %v1374
    %v1376 = vrot.slane %v1343, %v1375
    %v1385 = vmul.f32 %v997, %v1348
    %v1386 = vmul.f32 %v997, %v1352
    %v1387 = vmul.f32 %v997, %v1356
    %v1388 = vmul.f32 %v997, %v1360
    %v1389 = vmul.f32 %v997, %v1364
    %v1390 = vmul.f32 %v997, %v1368
    %v1391 = vmul.f32 %v997, %v1372
    %v1392 = vmul.f32 %v997, %v1376
    %v1393 = vadd.f32 %v1334, %v1385
    %v1394 = vadd.f32 %v1335, %v1386
    %v1395 = vadd.f32 %v1336, %v1387
    %v1396 = vadd.f32 %v1337, %v1388
    %v1397 = vadd.f32 %v1338, %v1389
    %v1398 = vadd.f32 %v1339, %v1390
    %v1399 = vadd.f32 %v1340, %v1391
    %v1400 = vadd.f32 %v1341, %v1392
    %v1401 = vld [vmem:[%s13] sm:$0xff]
    %v1403 = vlaneseq
    %v1404 = vshrl.u32 %v1403, 7
    %v1405 = vsub.s32 0, %v1404
    %v1406 = vrot.slane %v1401, %v1405
    %v1407 = vlaneseq
    %v1408 = vshrl.u32 %v1407, 7
    %v1409 = vsub.s32 1, %v1408
    %v1410 = vrot.slane %v1401, %v1409
    %v1411 = vlaneseq
    %v1412 = vshrl.u32 %v1411, 7
    %v1413 = vsub.s32 2, %v1412
    %v1414 = vrot.slane %v1401, %v1413
    %v1415 = vlaneseq
    %v1416 = vshrl.u32 %v1415, 7
    %v1417 = vsub.s32 3, %v1416
    %v1418 = vrot.slane %v1401, %v1417
    %v1419 = vlaneseq
    %v1420 = vshrl.u32 %v1419, 7
    %v1421 = vsub.s32 4, %v1420
    %v1422 = vrot.slane %v1401, %v1421
    %v1423 = vlaneseq
    %v1424 = vshrl.u32 %v1423, 7
    %v1425 = vsub.s32 5, %v1424
    %v1426 = vrot.slane %v1401, %v1425
    %v1427 = vlaneseq
    %v1428 = vshrl.u32 %v1427, 7
    %v1429 = vsub.s32 6, %v1428
    %v1430 = vrot.slane %v1401, %v1429
    %v1431 = vlaneseq
    %v1432 = vshrl.u32 %v1431, 7
    %v1433 = vsub.s32 7, %v1432
    %v1434 = vrot.slane %v1401, %v1433
    %v1443 = vadd.f32 %v1393, %v1406
    %v1444 = vadd.f32 %v1394, %v1410
    %v1445 = vadd.f32 %v1395, %v1414
    %v1446 = vadd.f32 %v1396, %v1418
    %v1447 = vadd.f32 %v1397, %v1422
    %v1448 = vadd.f32 %v1398, %v1426
    %v1449 = vadd.f32 %v1399, %v1430
    %v1450 = vadd.f32 %v1400, %v1434
    %v1451 = vmax.f32 %v1443, 0.0
    %v1452 = vmax.f32 %v1444, 0.0
    %v1453 = vmax.f32 %v1445, 0.0
    %v1454 = vmax.f32 %v1446, 0.0
    %v1455 = vmax.f32 %v1447, 0.0
    %v1456 = vmax.f32 %v1448, 0.0
    %v1457 = vmax.f32 %v1449, 0.0
    %v1458 = vmax.f32 %v1450, 0.0
    %v1459 = vstv %s977
    %v1460 = vmul.f32 %v1459, %v1451
    %v1461 = vmul.f32 %v1459, %v1452
    %v1462 = vmul.f32 %v1459, %v1453
    %v1463 = vmul.f32 %v1459, %v1454
    %v1464 = vmul.f32 %v1459, %v1455
    %v1465 = vmul.f32 %v1459, %v1456
    %v1466 = vmul.f32 %v1459, %v1457
    %v1467 = vmul.f32 %v1459, %v1458
    %v1468 = vadd.f32 %v1225, %v1460
    %v1469 = vadd.f32 %v1226, %v1461
    %v1470 = vadd.f32 %v1227, %v1462
    %v1471 = vadd.f32 %v1228, %v1463
    %v1472 = vadd.f32 %v1229, %v1464
    %v1473 = vadd.f32 %v1230, %v1465
    %v1474 = vadd.f32 %v1231, %v1466
    %v1475 = vadd.f32 %v1232, %v1467
    %v1476 = vld [vmem:[#allocation19] ss:$4 sm:$0xff]
    %v1478 = vlaneseq
    %v1479 = vshrl.u32 %v1478, 7
    %v1480 = vsub.s32 0, %v1479
    %v1481 = vrot.slane %v1476, %v1480
    %v1482 = vlaneseq
    %v1483 = vshrl.u32 %v1482, 7
    %v1484 = vsub.s32 1, %v1483
    %v1485 = vrot.slane %v1476, %v1484
    %v1486 = vlaneseq
    %v1487 = vshrl.u32 %v1486, 7
    %v1488 = vsub.s32 2, %v1487
    %v1489 = vrot.slane %v1476, %v1488
    %v1490 = vlaneseq
    %v1491 = vshrl.u32 %v1490, 7
    %v1492 = vsub.s32 3, %v1491
    %v1493 = vrot.slane %v1476, %v1492
    %v1494 = vlaneseq
    %v1495 = vshrl.u32 %v1494, 7
    %v1496 = vsub.s32 4, %v1495
    %v1497 = vrot.slane %v1476, %v1496
    %v1498 = vlaneseq
    %v1499 = vshrl.u32 %v1498, 7
    %v1500 = vsub.s32 5, %v1499
    %v1501 = vrot.slane %v1476, %v1500
    %v1502 = vlaneseq
    %v1503 = vshrl.u32 %v1502, 7
    %v1504 = vsub.s32 6, %v1503
    %v1505 = vrot.slane %v1476, %v1504
    %v1506 = vlaneseq
    %v1507 = vshrl.u32 %v1506, 7
    %v1508 = vsub.s32 7, %v1507
    %v1509 = vrot.slane %v1476, %v1508
    %v1518 = vmul.f32 %v985, %v1481
    %v1519 = vmul.f32 %v985, %v1485
    %v1520 = vmul.f32 %v985, %v1489
    %v1521 = vmul.f32 %v985, %v1493
    %v1522 = vmul.f32 %v985, %v1497
    %v1523 = vmul.f32 %v985, %v1501
    %v1524 = vmul.f32 %v985, %v1505
    %v1525 = vmul.f32 %v985, %v1509
    %s1526 = scalar_lea.vmem [#allocation19], 1
    %v1527 = vld [vmem:[%s1526] ss:$4 sm:$0xff]
    %v1529 = vlaneseq
    %v1530 = vshrl.u32 %v1529, 7
    %v1531 = vsub.s32 0, %v1530
    %v1532 = vrot.slane %v1527, %v1531
    %v1533 = vlaneseq
    %v1534 = vshrl.u32 %v1533, 7
    %v1535 = vsub.s32 1, %v1534
    %v1536 = vrot.slane %v1527, %v1535
    %v1537 = vlaneseq
    %v1538 = vshrl.u32 %v1537, 7
    %v1539 = vsub.s32 2, %v1538
    %v1540 = vrot.slane %v1527, %v1539
    %v1541 = vlaneseq
    %v1542 = vshrl.u32 %v1541, 7
    %v1543 = vsub.s32 3, %v1542
    %v1544 = vrot.slane %v1527, %v1543
    %v1545 = vlaneseq
    %v1546 = vshrl.u32 %v1545, 7
    %v1547 = vsub.s32 4, %v1546
    %v1548 = vrot.slane %v1527, %v1547
    %v1549 = vlaneseq
    %v1550 = vshrl.u32 %v1549, 7
    %v1551 = vsub.s32 5, %v1550
    %v1552 = vrot.slane %v1527, %v1551
    %v1553 = vlaneseq
    %v1554 = vshrl.u32 %v1553, 7
    %v1555 = vsub.s32 6, %v1554
    %v1556 = vrot.slane %v1527, %v1555
    %v1557 = vlaneseq
    %v1558 = vshrl.u32 %v1557, 7
    %v1559 = vsub.s32 7, %v1558
    %v1560 = vrot.slane %v1527, %v1559
    %v1569 = vmul.f32 %v991, %v1532
    %v1570 = vmul.f32 %v991, %v1536
    %v1571 = vmul.f32 %v991, %v1540
    %v1572 = vmul.f32 %v991, %v1544
    %v1573 = vmul.f32 %v991, %v1548
    %v1574 = vmul.f32 %v991, %v1552
    %v1575 = vmul.f32 %v991, %v1556
    %v1576 = vmul.f32 %v991, %v1560
    %v1577 = vadd.f32 %v1518, %v1569
    %v1578 = vadd.f32 %v1519, %v1570
    %v1579 = vadd.f32 %v1520, %v1571
    %v1580 = vadd.f32 %v1521, %v1572
    %v1581 = vadd.f32 %v1522, %v1573
    %v1582 = vadd.f32 %v1523, %v1574
    %v1583 = vadd.f32 %v1524, %v1575
    %v1584 = vadd.f32 %v1525, %v1576
    %s1585 = scalar_lea.vmem [#allocation19], 2
    %v1586 = vld [vmem:[%s1585] ss:$4 sm:$0xff]
    %v1588 = vlaneseq
    %v1589 = vshrl.u32 %v1588, 7
    %v1590 = vsub.s32 0, %v1589
    %v1591 = vrot.slane %v1586, %v1590
    %v1592 = vlaneseq
    %v1593 = vshrl.u32 %v1592, 7
    %v1594 = vsub.s32 1, %v1593
    %v1595 = vrot.slane %v1586, %v1594
    %v1596 = vlaneseq
    %v1597 = vshrl.u32 %v1596, 7
    %v1598 = vsub.s32 2, %v1597
    %v1599 = vrot.slane %v1586, %v1598
    %v1600 = vlaneseq
    %v1601 = vshrl.u32 %v1600, 7
    %v1602 = vsub.s32 3, %v1601
    %v1603 = vrot.slane %v1586, %v1602
    %v1604 = vlaneseq
    %v1605 = vshrl.u32 %v1604, 7
    %v1606 = vsub.s32 4, %v1605
    %v1607 = vrot.slane %v1586, %v1606
    %v1608 = vlaneseq
    %v1609 = vshrl.u32 %v1608, 7
    %v1610 = vsub.s32 5, %v1609
    %v1611 = vrot.slane %v1586, %v1610
    %v1612 = vlaneseq
    %v1613 = vshrl.u32 %v1612, 7
    %v1614 = vsub.s32 6, %v1613
    %v1615 = vrot.slane %v1586, %v1614
    %v1616 = vlaneseq
    %v1617 = vshrl.u32 %v1616, 7
    %v1618 = vsub.s32 7, %v1617
    %v1619 = vrot.slane %v1586, %v1618
    %v1628 = vmul.f32 %v997, %v1591
    %v1629 = vmul.f32 %v997, %v1595
    %v1630 = vmul.f32 %v997, %v1599
    %v1631 = vmul.f32 %v997, %v1603
    %v1632 = vmul.f32 %v997, %v1607
    %v1633 = vmul.f32 %v997, %v1611
    %v1634 = vmul.f32 %v997, %v1615
    %v1635 = vmul.f32 %v997, %v1619
    %v1636 = vadd.f32 %v1577, %v1628
    %v1637 = vadd.f32 %v1578, %v1629
    %v1638 = vadd.f32 %v1579, %v1630
    %v1639 = vadd.f32 %v1580, %v1631
    %v1640 = vadd.f32 %v1581, %v1632
    %v1641 = vadd.f32 %v1582, %v1633
    %v1642 = vadd.f32 %v1583, %v1634
    %v1643 = vadd.f32 %v1584, %v1635
    %v1644 = vld [vmem:[#allocation21] sm:$0xff]
    %v1646 = vlaneseq
    %v1647 = vshrl.u32 %v1646, 7
    %v1648 = vsub.s32 0, %v1647
    %v1649 = vrot.slane %v1644, %v1648
    %v1650 = vlaneseq
    %v1651 = vshrl.u32 %v1650, 7
    %v1652 = vsub.s32 1, %v1651
    %v1653 = vrot.slane %v1644, %v1652
    %v1654 = vlaneseq
    %v1655 = vshrl.u32 %v1654, 7
    %v1656 = vsub.s32 2, %v1655
    %v1657 = vrot.slane %v1644, %v1656
    %v1658 = vlaneseq
    %v1659 = vshrl.u32 %v1658, 7
    %v1660 = vsub.s32 3, %v1659
    %v1661 = vrot.slane %v1644, %v1660
    %v1662 = vlaneseq
    %v1663 = vshrl.u32 %v1662, 7
    %v1664 = vsub.s32 4, %v1663
    %v1665 = vrot.slane %v1644, %v1664
    %v1666 = vlaneseq
    %v1667 = vshrl.u32 %v1666, 7
    %v1668 = vsub.s32 5, %v1667
    %v1669 = vrot.slane %v1644, %v1668
    %v1670 = vlaneseq
    %v1671 = vshrl.u32 %v1670, 7
    %v1672 = vsub.s32 6, %v1671
    %v1673 = vrot.slane %v1644, %v1672
    %v1674 = vlaneseq
    %v1675 = vshrl.u32 %v1674, 7
    %v1676 = vsub.s32 7, %v1675
    %v1677 = vrot.slane %v1644, %v1676
    %v1686 = vadd.f32 %v1636, %v1649
    %v1687 = vadd.f32 %v1637, %v1653
    %v1688 = vadd.f32 %v1638, %v1657
    %v1689 = vadd.f32 %v1639, %v1661
    %v1690 = vadd.f32 %v1640, %v1665
    %v1691 = vadd.f32 %v1641, %v1669
    %v1692 = vadd.f32 %v1642, %v1673
    %v1693 = vadd.f32 %v1643, %v1677
    %v1694 = vmax.f32 %v1686, 0.0
    %v1695 = vmax.f32 %v1687, 0.0
    %v1696 = vmax.f32 %v1688, 0.0
    %v1697 = vmax.f32 %v1689, 0.0
    %v1698 = vmax.f32 %v1690, 0.0
    %v1699 = vmax.f32 %v1691, 0.0
    %v1700 = vmax.f32 %v1692, 0.0
    %v1701 = vmax.f32 %v1693, 0.0
    %v1702 = vstv %s978
    %v1703 = vmul.f32 %v1702, %v1694
    %v1704 = vmul.f32 %v1702, %v1695
    %v1705 = vmul.f32 %v1702, %v1696
    %v1706 = vmul.f32 %v1702, %v1697
    %v1707 = vmul.f32 %v1702, %v1698
    %v1708 = vmul.f32 %v1702, %v1699
    %v1709 = vmul.f32 %v1702, %v1700
    %v1710 = vmul.f32 %v1702, %v1701
    %v1711 = vadd.f32 %v1468, %v1703
    %v1712 = vadd.f32 %v1469, %v1704
    %v1713 = vadd.f32 %v1470, %v1705
    %v1714 = vadd.f32 %v1471, %v1706
    %v1715 = vadd.f32 %v1472, %v1707
    %v1716 = vadd.f32 %v1473, %v1708
    %v1717 = vadd.f32 %v1474, %v1709
    %v1718 = vadd.f32 %v1475, %v1710
    %v1719 = vstv %s979
    %v1720 = vadd.f32 %v1711, %v1719
    %v1721 = vadd.f32 %v1712, %v1719
    %v1722 = vadd.f32 %v1713, %v1719
    %v1723 = vadd.f32 %v1714, %v1719
    %v1724 = vadd.f32 %v1715, %v1719
    %v1725 = vadd.f32 %v1716, %v1719
    %v1726 = vadd.f32 %v1717, %v1719
    %v1727 = vadd.f32 %v1718, %v1719
    %v1728 = vmax.f32 %v1720, 0.0
    %v1729 = vmax.f32 %v1721, 0.0
    %v1730 = vmax.f32 %v1722, 0.0
    %v1731 = vmax.f32 %v1723, 0.0
    %v1732 = vmax.f32 %v1724, 0.0
    %v1733 = vmax.f32 %v1725, 0.0
    %v1734 = vmax.f32 %v1726, 0.0
    %v1735 = vmax.f32 %v1727, 0.0
    %v1736 = vpack.c.bf16 %v1728, %v968
    %v1737 = vpack.c.bf16 %v1729, %v969
    %v1738 = vpack.c.bf16 %v1730, %v970
    %v1739 = vpack.c.bf16 %v1731, %v971
    %v1740 = vpack.c.bf16 %v1732, %v972
    %v1741 = vpack.c.bf16 %v1733, %v973
    %v1742 = vpack.c.bf16 %v1734, %v974
    %v1743 = vpack.c.bf16 %v1735, %v975
    %v1744 = vld [vmem:[#allocation22] sm:$0xff]
    %v1745 = vld [vmem:[#allocation22 + $0x8] sm:$0xff]
    %v1746 = vld [vmem:[#allocation22 + $0x10] sm:$0xff]
    %v1747 = vld [vmem:[#allocation22 + $0x18] sm:$0xff]
    %v1748 = vld [vmem:[#allocation22 + $0x20] sm:$0xff]
    %v1749 = vld [vmem:[#allocation22 + $0x28] sm:$0xff]
    %v1750 = vld [vmem:[#allocation22 + $0x30] sm:$0xff]
    %v1751 = vld [vmem:[#allocation22 + $0x38] sm:$0xff]
    %v1752 = vld [vmem:[#allocation22 + $0x40] sm:$0xff]
    %v1753 = vld [vmem:[#allocation22 + $0x48] sm:$0xff]
    %v1754 = vld [vmem:[#allocation22 + $0x50] sm:$0xff]
    %v1755 = vld [vmem:[#allocation22 + $0x58] sm:$0xff]
    %v1756 = vld [vmem:[#allocation22 + $0x60] sm:$0xff]
    %v1757 = vld [vmem:[#allocation22 + $0x68] sm:$0xff]
    %v1758 = vld [vmem:[#allocation22 + $0x70] sm:$0xff]
    %v1759 = vld [vmem:[#allocation22 + $0x78] sm:$0xff]
    %v1760 = vld [vmem:[#allocation22 + $0x80] sm:$0xff]
    %v1761 = vld [vmem:[#allocation22 + $0x88] sm:$0xff]
    %v1762 = vld [vmem:[#allocation22 + $0x90] sm:$0xff]
    %v1763 = vld [vmem:[#allocation22 + $0x98] sm:$0xff]
    %v1764 = vld [vmem:[#allocation22 + $0xa0] sm:$0xff]
    %v1765 = vld [vmem:[#allocation22 + $0xa8] sm:$0xff]
    %v1766 = vld [vmem:[#allocation22 + $0xb0] sm:$0xff]
    %v1767 = vld [vmem:[#allocation22 + $0xb8] sm:$0xff]
    %v1768 = vld [vmem:[#allocation22 + $0xc0] sm:$0xff]
    %v1769 = vld [vmem:[#allocation22 + $0xc8] sm:$0xff]
    %v1770 = vld [vmem:[#allocation22 + $0xd0] sm:$0xff]
    %v1771 = vld [vmem:[#allocation22 + $0xd8] sm:$0xff]
    %v1772 = vld [vmem:[#allocation22 + $0xe0] sm:$0xff]
    %v1773 = vld [vmem:[#allocation22 + $0xe8] sm:$0xff]
    %v1774 = vld [vmem:[#allocation22 + $0xf0] sm:$0xff]
    %v1775 = vld [vmem:[#allocation22 + $0xf8] sm:$0xff]
    %v1776 = vld [vmem:[#allocation22 + $0x100] sm:$0xff]
    %v1777 = vld [vmem:[#allocation22 + $0x108] sm:$0xff]
    %v1778 = vld [vmem:[#allocation22 + $0x110] sm:$0xff]
    %v1779 = vld [vmem:[#allocation22 + $0x118] sm:$0xff]
    %v1780 = vld [vmem:[#allocation22 + $0x120] sm:$0xff]
    %v1781 = vld [vmem:[#allocation22 + $0x128] sm:$0xff]
    %v1782 = vld [vmem:[#allocation22 + $0x130] sm:$0xff]
    %v1783 = vld [vmem:[#allocation22 + $0x138] sm:$0xff]
    %v1784 = vld [vmem:[#allocation22 + $0x140] sm:$0xff]
    %v1785 = vld [vmem:[#allocation22 + $0x148] sm:$0xff]
    %v1786 = vld [vmem:[#allocation22 + $0x150] sm:$0xff]
    %v1787 = vld [vmem:[#allocation22 + $0x158] sm:$0xff]
    %v1788 = vld [vmem:[#allocation22 + $0x160] sm:$0xff]
    %v1789 = vld [vmem:[#allocation22 + $0x168] sm:$0xff]
    %v1790 = vld [vmem:[#allocation22 + $0x170] sm:$0xff]
    %v1791 = vld [vmem:[#allocation22 + $0x178] sm:$0xff]
    %v1792 = vld [vmem:[#allocation22 + $0x180] sm:$0xff]
    %v1793 = vld [vmem:[#allocation22 + $0x188] sm:$0xff]
    %v1794 = vld [vmem:[#allocation22 + $0x190] sm:$0xff]
    %v1795 = vld [vmem:[#allocation22 + $0x198] sm:$0xff]
    %v1796 = vld [vmem:[#allocation22 + $0x1a0] sm:$0xff]
    %v1797 = vld [vmem:[#allocation22 + $0x1a8] sm:$0xff]
    %v1798 = vld [vmem:[#allocation22 + $0x1b0] sm:$0xff]
    %v1799 = vld [vmem:[#allocation22 + $0x1b8] sm:$0xff]
    %v1800 = vld [vmem:[#allocation22 + $0x1c0] sm:$0xff]
    %v1801 = vld [vmem:[#allocation22 + $0x1c8] sm:$0xff]
    %v1802 = vld [vmem:[#allocation22 + $0x1d0] sm:$0xff]
    %v1803 = vld [vmem:[#allocation22 + $0x1d8] sm:$0xff]
    %v1804 = vld [vmem:[#allocation22 + $0x1e0] sm:$0xff]
    %v1805 = vld [vmem:[#allocation22 + $0x1e8] sm:$0xff]
    %v1806 = vld [vmem:[#allocation22 + $0x1f0] sm:$0xff]
    %v1807 = vld [vmem:[#allocation22 + $0x1f8] sm:$0xff]
    %v1808 = vld [vmem:[#allocation22 + $0x200] sm:$0xff]
    %v1809 = vld [vmem:[#allocation22 + $0x208] sm:$0xff]
    %v1810 = vld [vmem:[#allocation22 + $0x210] sm:$0xff]
    %v1811 = vld [vmem:[#allocation22 + $0x218] sm:$0xff]
    %v1812 = vld [vmem:[#allocation22 + $0x220] sm:$0xff]
    %v1813 = vld [vmem:[#allocation22 + $0x228] sm:$0xff]
    %v1814 = vld [vmem:[#allocation22 + $0x230] sm:$0xff]
    %v1815 = vld [vmem:[#allocation22 + $0x238] sm:$0xff]
    %v1816 = vld [vmem:[#allocation22 + $0x240] sm:$0xff]
    %v1817 = vld [vmem:[#allocation22 + $0x248] sm:$0xff]
    %v1818 = vld [vmem:[#allocation22 + $0x250] sm:$0xff]
    %v1819 = vld [vmem:[#allocation22 + $0x258] sm:$0xff]
    %v1820 = vld [vmem:[#allocation22 + $0x260] sm:$0xff]
    %v1821 = vld [vmem:[#allocation22 + $0x268] sm:$0xff]
    %v1822 = vld [vmem:[#allocation22 + $0x270] sm:$0xff]
    %v1823 = vld [vmem:[#allocation22 + $0x278] sm:$0xff]
    %v1824 = vld [vmem:[#allocation22 + $0x280] sm:$0xff]
    %v1825 = vld [vmem:[#allocation22 + $0x288] sm:$0xff]
    %v1826 = vld [vmem:[#allocation22 + $0x290] sm:$0xff]
    %v1827 = vld [vmem:[#allocation22 + $0x298] sm:$0xff]
    %v1828 = vld [vmem:[#allocation22 + $0x2a0] sm:$0xff]
    %v1829 = vld [vmem:[#allocation22 + $0x2a8] sm:$0xff]
    %v1830 = vld [vmem:[#allocation22 + $0x2b0] sm:$0xff]
    %v1831 = vld [vmem:[#allocation22 + $0x2b8] sm:$0xff]
    %v1832 = vld [vmem:[#allocation22 + $0x2c0] sm:$0xff]
    %v1833 = vld [vmem:[#allocation22 + $0x2c8] sm:$0xff]
    %v1834 = vld [vmem:[#allocation22 + $0x2d0] sm:$0xff]
    %v1835 = vld [vmem:[#allocation22 + $0x2d8] sm:$0xff]
    %v1836 = vld [vmem:[#allocation22 + $0x2e0] sm:$0xff]
    %v1837 = vld [vmem:[#allocation22 + $0x2e8] sm:$0xff]
    %v1838 = vld [vmem:[#allocation22 + $0x2f0] sm:$0xff]
    %v1839 = vld [vmem:[#allocation22 + $0x2f8] sm:$0xff]
    %v1840 = vld [vmem:[#allocation22 + $0x300] sm:$0xff]
    %v1841 = vld [vmem:[#allocation22 + $0x308] sm:$0xff]
    %v1842 = vld [vmem:[#allocation22 + $0x310] sm:$0xff]
    %v1843 = vld [vmem:[#allocation22 + $0x318] sm:$0xff]
    %v1844 = vld [vmem:[#allocation22 + $0x320] sm:$0xff]
    %v1845 = vld [vmem:[#allocation22 + $0x328] sm:$0xff]
    %v1846 = vld [vmem:[#allocation22 + $0x330] sm:$0xff]
    %v1847 = vld [vmem:[#allocation22 + $0x338] sm:$0xff]
    %v1848 = vld [vmem:[#allocation22 + $0x340] sm:$0xff]
    %v1849 = vld [vmem:[#allocation22 + $0x348] sm:$0xff]
    %v1850 = vld [vmem:[#allocation22 + $0x350] sm:$0xff]
    %v1851 = vld [vmem:[#allocation22 + $0x358] sm:$0xff]
    %v1852 = vld [vmem:[#allocation22 + $0x360] sm:$0xff]
    %v1853 = vld [vmem:[#allocation22 + $0x368] sm:$0xff]
    %v1854 = vld [vmem:[#allocation22 + $0x370] sm:$0xff]
    %v1855 = vld [vmem:[#allocation22 + $0x378] sm:$0xff]
    %v1856 = vld [vmem:[#allocation22 + $0x380] sm:$0xff]
    %v1857 = vld [vmem:[#allocation22 + $0x388] sm:$0xff]
    %v1858 = vld [vmem:[#allocation22 + $0x390] sm:$0xff]
    %v1859 = vld [vmem:[#allocation22 + $0x398] sm:$0xff]
    %v1860 = vld [vmem:[#allocation22 + $0x3a0] sm:$0xff]
    %v1861 = vld [vmem:[#allocation22 + $0x3a8] sm:$0xff]
    %v1862 = vld [vmem:[#allocation22 + $0x3b0] sm:$0xff]
    %v1863 = vld [vmem:[#allocation22 + $0x3b8] sm:$0xff]
    %v1864 = vld [vmem:[#allocation22 + $0x3c0] sm:$0xff]
    %v1865 = vld [vmem:[#allocation22 + $0x3c8] sm:$0xff]
    %v1866 = vld [vmem:[#allocation22 + $0x3d0] sm:$0xff]
    %v1867 = vld [vmem:[#allocation22 + $0x3d8] sm:$0xff]
    %v1868 = vld [vmem:[#allocation22 + $0x3e0] sm:$0xff]
    %v1869 = vld [vmem:[#allocation22 + $0x3e8] sm:$0xff]
    %v1870 = vld [vmem:[#allocation22 + $0x3f0] sm:$0xff]
    %v1871 = vld [vmem:[#allocation22 + $0x3f8] sm:$0xff]
    %v2000 = vunpack.c.l.b16 %v1744
    %v2001 = vunpack.c.h.b16 %v1744
    %v2002 = vunpack.c.l.b16 %v1745
    %v2003 = vunpack.c.h.b16 %v1745
    %v2004 = vunpack.c.l.b16 %v1746
    %v2005 = vunpack.c.h.b16 %v1746
    %v2006 = vunpack.c.l.b16 %v1747
    %v2007 = vunpack.c.h.b16 %v1747
    %v2008 = vunpack.c.l.b16 %v1748
    %v2009 = vunpack.c.h.b16 %v1748
    %v2010 = vunpack.c.l.b16 %v1749
    %v2011 = vunpack.c.h.b16 %v1749
    %v2012 = vunpack.c.l.b16 %v1750
    %v2013 = vunpack.c.h.b16 %v1750
    %v2014 = vunpack.c.l.b16 %v1751
    %v2015 = vunpack.c.h.b16 %v1751
    %v2016 = vunpack.c.l.b16 %v1752
    %v2017 = vunpack.c.h.b16 %v1752
    %v2018 = vunpack.c.l.b16 %v1753
    %v2019 = vunpack.c.h.b16 %v1753
    %v2020 = vunpack.c.l.b16 %v1754
    %v2021 = vunpack.c.h.b16 %v1754
    %v2022 = vunpack.c.l.b16 %v1755
    %v2023 = vunpack.c.h.b16 %v1755
    %v2024 = vunpack.c.l.b16 %v1756
    %v2025 = vunpack.c.h.b16 %v1756
    %v2026 = vunpack.c.l.b16 %v1757
    %v2027 = vunpack.c.h.b16 %v1757
    %v2028 = vunpack.c.l.b16 %v1758
    %v2029 = vunpack.c.h.b16 %v1758
    %v2030 = vunpack.c.l.b16 %v1759
    %v2031 = vunpack.c.h.b16 %v1759
    %v2032 = vunpack.c.l.b16 %v1760
    %v2033 = vunpack.c.h.b16 %v1760
    %v2034 = vunpack.c.l.b16 %v1761
    %v2035 = vunpack.c.h.b16 %v1761
    %v2036 = vunpack.c.l.b16 %v1762
    %v2037 = vunpack.c.h.b16 %v1762
    %v2038 = vunpack.c.l.b16 %v1763
    %v2039 = vunpack.c.h.b16 %v1763
    %v2040 = vunpack.c.l.b16 %v1764
    %v2041 = vunpack.c.h.b16 %v1764
    %v2042 = vunpack.c.l.b16 %v1765
    %v2043 = vunpack.c.h.b16 %v1765
    %v2044 = vunpack.c.l.b16 %v1766
    %v2045 = vunpack.c.h.b16 %v1766
    %v2046 = vunpack.c.l.b16 %v1767
    %v2047 = vunpack.c.h.b16 %v1767
    %v2048 = vunpack.c.l.b16 %v1768
    %v2049 = vunpack.c.h.b16 %v1768
    %v2050 = vunpack.c.l.b16 %v1769
    %v2051 = vunpack.c.h.b16 %v1769
    %v2052 = vunpack.c.l.b16 %v1770
    %v2053 = vunpack.c.h.b16 %v1770
    %v2054 = vunpack.c.l.b16 %v1771
    %v2055 = vunpack.c.h.b16 %v1771
    %v2056 = vunpack.c.l.b16 %v1772
    %v2057 = vunpack.c.h.b16 %v1772
    %v2058 = vunpack.c.l.b16 %v1773
    %v2059 = vunpack.c.h.b16 %v1773
    %v2060 = vunpack.c.l.b16 %v1774
    %v2061 = vunpack.c.h.b16 %v1774
    %v2062 = vunpack.c.l.b16 %v1775
    %v2063 = vunpack.c.h.b16 %v1775
    %v2064 = vunpack.c.l.b16 %v1776
    %v2065 = vunpack.c.h.b16 %v1776
    %v2066 = vunpack.c.l.b16 %v1777
    %v2067 = vunpack.c.h.b16 %v1777
    %v2068 = vunpack.c.l.b16 %v1778
    %v2069 = vunpack.c.h.b16 %v1778
    %v2070 = vunpack.c.l.b16 %v1779
    %v2071 = vunpack.c.h.b16 %v1779
    %v2072 = vunpack.c.l.b16 %v1780
    %v2073 = vunpack.c.h.b16 %v1780
    %v2074 = vunpack.c.l.b16 %v1781
    %v2075 = vunpack.c.h.b16 %v1781
    %v2076 = vunpack.c.l.b16 %v1782
    %v2077 = vunpack.c.h.b16 %v1782
    %v2078 = vunpack.c.l.b16 %v1783
    %v2079 = vunpack.c.h.b16 %v1783
    %v2080 = vunpack.c.l.b16 %v1784
    %v2081 = vunpack.c.h.b16 %v1784
    %v2082 = vunpack.c.l.b16 %v1785
    %v2083 = vunpack.c.h.b16 %v1785
    %v2084 = vunpack.c.l.b16 %v1786
    %v2085 = vunpack.c.h.b16 %v1786
    %v2086 = vunpack.c.l.b16 %v1787
    %v2087 = vunpack.c.h.b16 %v1787
    %v2088 = vunpack.c.l.b16 %v1788
    %v2089 = vunpack.c.h.b16 %v1788
    %v2090 = vunpack.c.l.b16 %v1789
    %v2091 = vunpack.c.h.b16 %v1789
    %v2092 = vunpack.c.l.b16 %v1790
    %v2093 = vunpack.c.h.b16 %v1790
    %v2094 = vunpack.c.l.b16 %v1791
    %v2095 = vunpack.c.h.b16 %v1791
    %v2096 = vunpack.c.l.b16 %v1792
    %v2097 = vunpack.c.h.b16 %v1792
    %v2098 = vunpack.c.l.b16 %v1793
    %v2099 = vunpack.c.h.b16 %v1793
    %v2100 = vunpack.c.l.b16 %v1794
    %v2101 = vunpack.c.h.b16 %v1794
    %v2102 = vunpack.c.l.b16 %v1795
    %v2103 = vunpack.c.h.b16 %v1795
    %v2104 = vunpack.c.l.b16 %v1796
    %v2105 = vunpack.c.h.b16 %v1796
    %v2106 = vunpack.c.l.b16 %v1797
    %v2107 = vunpack.c.h.b16 %v1797
    %v2108 = vunpack.c.l.b16 %v1798
    %v2109 = vunpack.c.h.b16 %v1798
    %v2110 = vunpack.c.l.b16 %v1799
    %v2111 = vunpack.c.h.b16 %v1799
    %v2112 = vunpack.c.l.b16 %v1800
    %v2113 = vunpack.c.h.b16 %v1800
    %v2114 = vunpack.c.l.b16 %v1801
    %v2115 = vunpack.c.h.b16 %v1801
    %v2116 = vunpack.c.l.b16 %v1802
    %v2117 = vunpack.c.h.b16 %v1802
    %v2118 = vunpack.c.l.b16 %v1803
    %v2119 = vunpack.c.h.b16 %v1803
    %v2120 = vunpack.c.l.b16 %v1804
    %v2121 = vunpack.c.h.b16 %v1804
    %v2122 = vunpack.c.l.b16 %v1805
    %v2123 = vunpack.c.h.b16 %v1805
    %v2124 = vunpack.c.l.b16 %v1806
    %v2125 = vunpack.c.h.b16 %v1806
    %v2126 = vunpack.c.l.b16 %v1807
    %v2127 = vunpack.c.h.b16 %v1807
    %v2128 = vunpack.c.l.b16 %v1808
    %v2129 = vunpack.c.h.b16 %v1808
    %v2130 = vunpack.c.l.b16 %v1809
    %v2131 = vunpack.c.h.b16 %v1809
    %v2132 = vunpack.c.l.b16 %v1810
    %v2133 = vunpack.c.h.b16 %v1810
    %v2134 = vunpack.c.l.b16 %v1811
    %v2135 = vunpack.c.h.b16 %v1811
    %v2136 = vunpack.c.l.b16 %v1812
    %v2137 = vunpack.c.h.b16 %v1812
    %v2138 = vunpack.c.l.b16 %v1813
    %v2139 = vunpack.c.h.b16 %v1813
    %v2140 = vunpack.c.l.b16 %v1814
    %v2141 = vunpack.c.h.b16 %v1814
    %v2142 = vunpack.c.l.b16 %v1815
    %v2143 = vunpack.c.h.b16 %v1815
    %v2144 = vunpack.c.l.b16 %v1816
    %v2145 = vunpack.c.h.b16 %v1816
    %v2146 = vunpack.c.l.b16 %v1817
    %v2147 = vunpack.c.h.b16 %v1817
    %v2148 = vunpack.c.l.b16 %v1818
    %v2149 = vunpack.c.h.b16 %v1818
    %v2150 = vunpack.c.l.b16 %v1819
    %v2151 = vunpack.c.h.b16 %v1819
    %v2152 = vunpack.c.l.b16 %v1820
    %v2153 = vunpack.c.h.b16 %v1820
    %v2154 = vunpack.c.l.b16 %v1821
    %v2155 = vunpack.c.h.b16 %v1821
    %v2156 = vunpack.c.l.b16 %v1822
    %v2157 = vunpack.c.h.b16 %v1822
    %v2158 = vunpack.c.l.b16 %v1823
    %v2159 = vunpack.c.h.b16 %v1823
    %v2160 = vunpack.c.l.b16 %v1824
    %v2161 = vunpack.c.h.b16 %v1824
    %v2162 = vunpack.c.l.b16 %v1825
    %v2163 = vunpack.c.h.b16 %v1825
    %v2164 = vunpack.c.l.b16 %v1826
    %v2165 = vunpack.c.h.b16 %v1826
    %v2166 = vunpack.c.l.b16 %v1827
    %v2167 = vunpack.c.h.b16 %v1827
    %v2168 = vunpack.c.l.b16 %v1828
    %v2169 = vunpack.c.h.b16 %v1828
    %v2170 = vunpack.c.l.b16 %v1829
    %v2171 = vunpack.c.h.b16 %v1829
    %v2172 = vunpack.c.l.b16 %v1830
    %v2173 = vunpack.c.h.b16 %v1830
    %v2174 = vunpack.c.l.b16 %v1831
    %v2175 = vunpack.c.h.b16 %v1831
    %v2176 = vunpack.c.l.b16 %v1832
    %v2177 = vunpack.c.h.b16 %v1832
    %v2178 = vunpack.c.l.b16 %v1833
    %v2179 = vunpack.c.h.b16 %v1833
    %v2180 = vunpack.c.l.b16 %v1834
    %v2181 = vunpack.c.h.b16 %v1834
    %v2182 = vunpack.c.l.b16 %v1835
    %v2183 = vunpack.c.h.b16 %v1835
    %v2184 = vunpack.c.l.b16 %v1836
    %v2185 = vunpack.c.h.b16 %v1836
    %v2186 = vunpack.c.l.b16 %v1837
    %v2187 = vunpack.c.h.b16 %v1837
    %v2188 = vunpack.c.l.b16 %v1838
    %v2189 = vunpack.c.h.b16 %v1838
    %v2190 = vunpack.c.l.b16 %v1839
    %v2191 = vunpack.c.h.b16 %v1839
    %v2192 = vunpack.c.l.b16 %v1840
    %v2193 = vunpack.c.h.b16 %v1840
    %v2194 = vunpack.c.l.b16 %v1841
    %v2195 = vunpack.c.h.b16 %v1841
    %v2196 = vunpack.c.l.b16 %v1842
    %v2197 = vunpack.c.h.b16 %v1842
    %v2198 = vunpack.c.l.b16 %v1843
    %v2199 = vunpack.c.h.b16 %v1843
    %v2200 = vunpack.c.l.b16 %v1844
    %v2201 = vunpack.c.h.b16 %v1844
    %v2202 = vunpack.c.l.b16 %v1845
    %v2203 = vunpack.c.h.b16 %v1845
    %v2204 = vunpack.c.l.b16 %v1846
    %v2205 = vunpack.c.h.b16 %v1846
    %v2206 = vunpack.c.l.b16 %v1847
    %v2207 = vunpack.c.h.b16 %v1847
    %v2208 = vunpack.c.l.b16 %v1848
    %v2209 = vunpack.c.h.b16 %v1848
    %v2210 = vunpack.c.l.b16 %v1849
    %v2211 = vunpack.c.h.b16 %v1849
    %v2212 = vunpack.c.l.b16 %v1850
    %v2213 = vunpack.c.h.b16 %v1850
    %v2214 = vunpack.c.l.b16 %v1851
    %v2215 = vunpack.c.h.b16 %v1851
    %v2216 = vunpack.c.l.b16 %v1852
    %v2217 = vunpack.c.h.b16 %v1852
    %v2218 = vunpack.c.l.b16 %v1853
    %v2219 = vunpack.c.h.b16 %v1853
    %v2220 = vunpack.c.l.b16 %v1854
    %v2221 = vunpack.c.h.b16 %v1854
    %v2222 = vunpack.c.l.b16 %v1855
    %v2223 = vunpack.c.h.b16 %v1855
    %v2224 = vunpack.c.l.b16 %v1856
    %v2225 = vunpack.c.h.b16 %v1856
    %v2226 = vunpack.c.l.b16 %v1857
    %v2227 = vunpack.c.h.b16 %v1857
    %v2228 = vunpack.c.l.b16 %v1858
    %v2229 = vunpack.c.h.b16 %v1858
    %v2230 = vunpack.c.l.b16 %v1859
    %v2231 = vunpack.c.h.b16 %v1859
    %v2232 = vunpack.c.l.b16 %v1860
    %v2233 = vunpack.c.h.b16 %v1860
    %v2234 = vunpack.c.l.b16 %v1861
    %v2235 = vunpack.c.h.b16 %v1861
    %v2236 = vunpack.c.l.b16 %v1862
    %v2237 = vunpack.c.h.b16 %v1862
    %v2238 = vunpack.c.l.b16 %v1863
    %v2239 = vunpack.c.h.b16 %v1863
    %v2240 = vunpack.c.l.b16 %v1864
    %v2241 = vunpack.c.h.b16 %v1864
    %v2242 = vunpack.c.l.b16 %v1865
    %v2243 = vunpack.c.h.b16 %v1865
    %v2244 = vunpack.c.l.b16 %v1866
    %v2245 = vunpack.c.h.b16 %v1866
    %v2246 = vunpack.c.l.b16 %v1867
    %v2247 = vunpack.c.h.b16 %v1867
    %v2248 = vunpack.c.l.b16 %v1868
    %v2249 = vunpack.c.h.b16 %v1868
    %v2250 = vunpack.c.l.b16 %v1869
    %v2251 = vunpack.c.h.b16 %v1869
    %v2252 = vunpack.c.l.b16 %v1870
    %v2253 = vunpack.c.h.b16 %v1870
    %v2254 = vunpack.c.l.b16 %v1871
    %v2255 = vunpack.c.h.b16 %v1871
    %v2256 = vpack.c.b16 %v2002, %v2000
    %v2257 = vpack.c.b16 %v2003, %v2001
    %v2258 = vpack.c.b16 %v2006, %v2004
    %v2259 = vpack.c.b16 %v2007, %v2005
    %v2260 = vpack.c.b16 %v2010, %v2008
    %v2261 = vpack.c.b16 %v2011, %v2009
    %v2262 = vpack.c.b16 %v2014, %v2012
    %v2263 = vpack.c.b16 %v2015, %v2013
    %v2264 = vpack.c.b16 %v2018, %v2016
    %v2265 = vpack.c.b16 %v2019, %v2017
    %v2266 = vpack.c.b16 %v2022, %v2020
    %v2267 = vpack.c.b16 %v2023, %v2021
    %v2268 = vpack.c.b16 %v2026, %v2024
    %v2269 = vpack.c.b16 %v2027, %v2025
    %v2270 = vpack.c.b16 %v2030, %v2028
    %v2271 = vpack.c.b16 %v2031, %v2029
    %v2272 = vpack.c.b16 %v2034, %v2032
    %v2273 = vpack.c.b16 %v2035, %v2033
    %v2274 = vpack.c.b16 %v2038, %v2036
    %v2275 = vpack.c.b16 %v2039, %v2037
    %v2276 = vpack.c.b16 %v2042, %v2040
    %v2277 = vpack.c.b16 %v2043, %v2041
    %v2278 = vpack.c.b16 %v2046, %v2044
    %v2279 = vpack.c.b16 %v2047, %v2045
    %v2280 = vpack.c.b16 %v2050, %v2048
    %v2281 = vpack.c.b16 %v2051, %v2049
    %v2282 = vpack.c.b16 %v2054, %v2052
    %v2283 = vpack.c.b16 %v2055, %v2053
    %v2284 = vpack.c.b16 %v2058, %v2056
    %v2285 = vpack.c.b16 %v2059, %v2057
    %v2286 = vpack.c.b16 %v2062, %v2060
    %v2287 = vpack.c.b16 %v2063, %v2061
    %v2288 = vpack.c.b16 %v2066, %v2064
    %v2289 = vpack.c.b16 %v2067, %v2065
    %v2290 = vpack.c.b16 %v2070, %v2068
    %v2291 = vpack.c.b16 %v2071, %v2069
    %v2292 = vpack.c.b16 %v2074, %v2072
    %v2293 = vpack.c.b16 %v2075, %v2073
    %v2294 = vpack.c.b16 %v2078, %v2076
    %v2295 = vpack.c.b16 %v2079, %v2077
    %v2296 = vpack.c.b16 %v2082, %v2080
    %v2297 = vpack.c.b16 %v2083, %v2081
    %v2298 = vpack.c.b16 %v2086, %v2084
    %v2299 = vpack.c.b16 %v2087, %v2085
    %v2300 = vpack.c.b16 %v2090, %v2088
    %v2301 = vpack.c.b16 %v2091, %v2089
    %v2302 = vpack.c.b16 %v2094, %v2092
    %v2303 = vpack.c.b16 %v2095, %v2093
    %v2304 = vpack.c.b16 %v2098, %v2096
    %v2305 = vpack.c.b16 %v2099, %v2097
    %v2306 = vpack.c.b16 %v2102, %v2100
    %v2307 = vpack.c.b16 %v2103, %v2101
    %v2308 = vpack.c.b16 %v2106, %v2104
    %v2309 = vpack.c.b16 %v2107, %v2105
    %v2310 = vpack.c.b16 %v2110, %v2108
    %v2311 = vpack.c.b16 %v2111, %v2109
    %v2312 = vpack.c.b16 %v2114, %v2112
    %v2313 = vpack.c.b16 %v2115, %v2113
    %v2314 = vpack.c.b16 %v2118, %v2116
    %v2315 = vpack.c.b16 %v2119, %v2117
    %v2316 = vpack.c.b16 %v2122, %v2120
    %v2317 = vpack.c.b16 %v2123, %v2121
    %v2318 = vpack.c.b16 %v2126, %v2124
    %v2319 = vpack.c.b16 %v2127, %v2125
    %v2320 = vpack.c.b16 %v2130, %v2128
    %v2321 = vpack.c.b16 %v2131, %v2129
    %v2322 = vpack.c.b16 %v2134, %v2132
    %v2323 = vpack.c.b16 %v2135, %v2133
    %v2324 = vpack.c.b16 %v2138, %v2136
    %v2325 = vpack.c.b16 %v2139, %v2137
    %v2326 = vpack.c.b16 %v2142, %v2140
    %v2327 = vpack.c.b16 %v2143, %v2141
    %v2328 = vpack.c.b16 %v2146, %v2144
    %v2329 = vpack.c.b16 %v2147, %v2145
    %v2330 = vpack.c.b16 %v2150, %v2148
    %v2331 = vpack.c.b16 %v2151, %v2149
    %v2332 = vpack.c.b16 %v2154, %v2152
    %v2333 = vpack.c.b16 %v2155, %v2153
    %v2334 = vpack.c.b16 %v2158, %v2156
    %v2335 = vpack.c.b16 %v2159, %v2157
    %v2336 = vpack.c.b16 %v2162, %v2160
    %v2337 = vpack.c.b16 %v2163, %v2161
    %v2338 = vpack.c.b16 %v2166, %v2164
    %v2339 = vpack.c.b16 %v2167, %v2165
    %v2340 = vpack.c.b16 %v2170, %v2168
    %v2341 = vpack.c.b16 %v2171, %v2169
    %v2342 = vpack.c.b16 %v2174, %v2172
    %v2343 = vpack.c.b16 %v2175, %v2173
    %v2344 = vpack.c.b16 %v2178, %v2176
    %v2345 = vpack.c.b16 %v2179, %v2177
    %v2346 = vpack.c.b16 %v2182, %v2180
    %v2347 = vpack.c.b16 %v2183, %v2181
    %v2348 = vpack.c.b16 %v2186, %v2184
    %v2349 = vpack.c.b16 %v2187, %v2185
    %v2350 = vpack.c.b16 %v2190, %v2188
    %v2351 = vpack.c.b16 %v2191, %v2189
    %v2352 = vpack.c.b16 %v2194, %v2192
    %v2353 = vpack.c.b16 %v2195, %v2193
    %v2354 = vpack.c.b16 %v2198, %v2196
    %v2355 = vpack.c.b16 %v2199, %v2197
    %v2356 = vpack.c.b16 %v2202, %v2200
    %v2357 = vpack.c.b16 %v2203, %v2201
    %v2358 = vpack.c.b16 %v2206, %v2204
    %v2359 = vpack.c.b16 %v2207, %v2205
    %v2360 = vpack.c.b16 %v2210, %v2208
    %v2361 = vpack.c.b16 %v2211, %v2209
    %v2362 = vpack.c.b16 %v2214, %v2212
    %v2363 = vpack.c.b16 %v2215, %v2213
    %v2364 = vpack.c.b16 %v2218, %v2216
    %v2365 = vpack.c.b16 %v2219, %v2217
    %v2366 = vpack.c.b16 %v2222, %v2220
    %v2367 = vpack.c.b16 %v2223, %v2221
    %v2368 = vpack.c.b16 %v2226, %v2224
    %v2369 = vpack.c.b16 %v2227, %v2225
    %v2370 = vpack.c.b16 %v2230, %v2228
    %v2371 = vpack.c.b16 %v2231, %v2229
    %v2372 = vpack.c.b16 %v2234, %v2232
    %v2373 = vpack.c.b16 %v2235, %v2233
    %v2374 = vpack.c.b16 %v2238, %v2236
    %v2375 = vpack.c.b16 %v2239, %v2237
    %v2376 = vpack.c.b16 %v2242, %v2240
    %v2377 = vpack.c.b16 %v2243, %v2241
    %v2378 = vpack.c.b16 %v2246, %v2244
    %v2379 = vpack.c.b16 %v2247, %v2245
    %v2380 = vpack.c.b16 %v2250, %v2248
    %v2381 = vpack.c.b16 %v2251, %v2249
    %v2382 = vpack.c.b16 %v2254, %v2252
    %v2383 = vpack.c.b16 %v2255, %v2253
    %2512 = vmatprep.subr.bf16.mxu0 %v2257
    %2513 = vmatpush1.bf16.msra.mxu0 %v2256
    %2514 = vmatprep.subr.bf16.mxu0 %v2259
    %2515 = vmatpush1.bf16.msra.mxu0 %v2258
    %2516 = vmatprep.subr.bf16.mxu0 %v2261
    %2517 = vmatpush1.bf16.msra.mxu0 %v2260
    %2518 = vmatprep.subr.bf16.mxu0 %v2263
    %2519 = vmatpush1.bf16.msra.mxu0 %v2262
    %2520 = vmatprep.subr.bf16.mxu0 %v2265
    %2521 = vmatpush1.bf16.msra.mxu0 %v2264
    %2522 = vmatprep.subr.bf16.mxu0 %v2267
    %2523 = vmatpush1.bf16.msra.mxu0 %v2266
    %2524 = vmatprep.subr.bf16.mxu0 %v2269
    %2525 = vmatpush1.bf16.msra.mxu0 %v2268
    %2526 = vmatprep.subr.bf16.mxu0 %v2271
    %2527 = vmatpush1.bf16.msra.mxu0 %v2270
    %2528 = vmatprep.subr.bf16.mxu0 %v2273
    %2529 = vmatpush1.bf16.msra.mxu0 %v2272
    %2530 = vmatprep.subr.bf16.mxu0 %v2275
    %2531 = vmatpush1.bf16.msra.mxu0 %v2274
    %2532 = vmatprep.subr.bf16.mxu0 %v2277
    %2533 = vmatpush1.bf16.msra.mxu0 %v2276
    %2534 = vmatprep.subr.bf16.mxu0 %v2279
    %2535 = vmatpush1.bf16.msra.mxu0 %v2278
    %2536 = vmatprep.subr.bf16.mxu0 %v2281
    %2537 = vmatpush1.bf16.msra.mxu0 %v2280
    %2538 = vmatprep.subr.bf16.mxu0 %v2283
    %2539 = vmatpush1.bf16.msra.mxu0 %v2282
    %2540 = vmatprep.subr.bf16.mxu0 %v2285
    %2541 = vmatpush1.bf16.msra.mxu0 %v2284
    %2542 = vmatprep.subr.bf16.mxu0 %v2287
    %2543 = vmatpush1.bf16.msra.mxu0 %v2286
    %2544 = vmatprep.mubr.bf16.mxu0 %v1737
    %2545 = vmatmul.mubr.bf16.gmra.mrb[0].mxu0 %v1736
    %v2546 = vpop.f32.mrb[0].mxu0
    %v2547 = vadd.f32 0.0, %v2546
    %v2548 = vpop.f32.mrb[0].mxu0
    %v2549 = vadd.f32 0.0, %v2548
    %v2550 = vpop.f32.mrb[0].mxu0
    %v2551 = vadd.f32 0.0, %v2550
    %v2552 = vpop.f32.mrb[0].mxu0
    %v2553 = vadd.f32 0.0, %v2552
    %2554 = vdwg.mxu0
    %2555 = vmatprep.subr.bf16.mxu0 %v2289
    %2556 = vmatpush1.bf16.msra.mxu0 %v2288
    %2557 = vmatprep.subr.bf16.mxu0 %v2291
    %2558 = vmatpush1.bf16.msra.mxu0 %v2290
    %2559 = vmatprep.subr.bf16.mxu0 %v2293
    %2560 = vmatpush1.bf16.msra.mxu0 %v2292
    %2561 = vmatprep.subr.bf16.mxu0 %v2295
    %2562 = vmatpush1.bf16.msra.mxu0 %v2294
    %2563 = vmatprep.subr.bf16.mxu0 %v2297
    %2564 = vmatpush1.bf16.msra.mxu0 %v2296
    %2565 = vmatprep.subr.bf16.mxu0 %v2299
    %2566 = vmatpush1.bf16.msra.mxu0 %v2298
    %2567 = vmatprep.subr.bf16.mxu0 %v2301
    %2568 = vmatpush1.bf16.msra.mxu0 %v2300
    %2569 = vmatprep.subr.bf16.mxu0 %v2303
    %2570 = vmatpush1.bf16.msra.mxu0 %v2302
    %2571 = vmatprep.subr.bf16.mxu0 %v2305
    %2572 = vmatpush1.bf16.msra.mxu0 %v2304
    %2573 = vmatprep.subr.bf16.mxu0 %v2307
    %2574 = vmatpush1.bf16.msra.mxu0 %v2306
    %2575 = vmatprep.subr.bf16.mxu0 %v2309
    %2576 = vmatpush1.bf16.msra.mxu0 %v2308
    %2577 = vmatprep.subr.bf16.mxu0 %v2311
    %2578 = vmatpush1.bf16.msra.mxu0 %v2310
    %2579 = vmatprep.subr.bf16.mxu0 %v2313
    %2580 = vmatpush1.bf16.msra.mxu0 %v2312
    %2581 = vmatprep.subr.bf16.mxu0 %v2315
    %2582 = vmatpush1.bf16.msra.mxu0 %v2314
    %2583 = vmatprep.subr.bf16.mxu0 %v2317
    %2584 = vmatpush1.bf16.msra.mxu0 %v2316
    %2585 = vmatprep.subr.bf16.mxu0 %v2319
    %2586 = vmatpush1.bf16.msra.mxu0 %v2318
    %2587 = vmatprep.mubr.bf16.mxu0 %v1739
    %2588 = vmatmul.mubr.bf16.gmra.mrb[0].mxu0 %v1738
    %v2589 = vpop.f32.mrb[0].mxu0
    %v2590 = vadd.f32 %v2547, %v2589
    %v2591 = vpop.f32.mrb[0].mxu0
    %v2592 = vadd.f32 %v2549, %v2591
    %v2593 = vpop.f32.mrb[0].mxu0
    %v2594 = vadd.f32 %v2551, %v2593
    %v2595 = vpop.f32.mrb[0].mxu0
    %v2596 = vadd.f32 %v2553, %v2595
    %2597 = vdwg.mxu0
    %2598 = vmatprep.subr.bf16.mxu0 %v2321
    %2599 = vmatpush1.bf16.msra.mxu0 %v2320
    %2600 = vmatprep.subr.bf16.mxu0 %v2323
    %2601 = vmatpush1.bf16.msra.mxu0 %v2322
    %2602 = vmatprep.subr.bf16.mxu0 %v2325
    %2603 = vmatpush1.bf16.msra.mxu0 %v2324
    %2604 = vmatprep.subr.bf16.mxu0 %v2327
    %2605 = vmatpush1.bf16.msra.mxu0 %v2326
    %2606 = vmatprep.subr.bf16.mxu0 %v2329
    %2607 = vmatpush1.bf16.msra.mxu0 %v2328
    %2608 = vmatprep.subr.bf16.mxu0 %v2331
    %2609 = vmatpush1.bf16.msra.mxu0 %v2330
    %2610 = vmatprep.subr.bf16.mxu0 %v2333
    %2611 = vmatpush1.bf16.msra.mxu0 %v2332
    %2612 = vmatprep.subr.bf16.mxu0 %v2335
    %2613 = vmatpush1.bf16.msra.mxu0 %v2334
    %2614 = vmatprep.subr.bf16.mxu0 %v2337
    %2615 = vmatpush1.bf16.msra.mxu0 %v2336
    %2616 = vmatprep.subr.bf16.mxu0 %v2339
    %2617 = vmatpush1.bf16.msra.mxu0 %v2338
    %2618 = vmatprep.subr.bf16.mxu0 %v2341
    %2619 = vmatpush1.bf16.msra.mxu0 %v2340
    %2620 = vmatprep.subr.bf16.mxu0 %v2343
    %2621 = vmatpush1.bf16.msra.mxu0 %v2342
    %2622 = vmatprep.subr.bf16.mxu0 %v2345
    %2623 = vmatpush1.bf16.msra.mxu0 %v2344
    %2624 = vmatprep.subr.bf16.mxu0 %v2347
    %2625 = vmatpush1.bf16.msra.mxu0 %v2346
    %2626 = vmatprep.subr.bf16.mxu0 %v2349
    %2627 = vmatpush1.bf16.msra.mxu0 %v2348
    %2628 = vmatprep.subr.bf16.mxu0 %v2351
    %2629 = vmatpush1.bf16.msra.mxu0 %v2350
    %2630 = vmatprep.mubr.bf16.mxu0 %v1741
    %2631 = vmatmul.mubr.bf16.gmra.mrb[0].mxu0 %v1740
    %v2632 = vpop.f32.mrb[0].mxu0
    %v2633 = vadd.f32 %v2590, %v2632
    %v2634 = vpop.f32.mrb[0].mxu0
    %v2635 = vadd.f32 %v2592, %v2634
    %v2636 = vpop.f32.mrb[0].mxu0
    %v2637 = vadd.f32 %v2594, %v2636
    %v2638 = vpop.f32.mrb[0].mxu0
    %v2639 = vadd.f32 %v2596, %v2638
    %2640 = vdwg.mxu0
    %2641 = vmatprep.subr.bf16.mxu0 %v2353
    %2642 = vmatpush1.bf16.msra.mxu0 %v2352
    %2643 = vmatprep.subr.bf16.mxu0 %v2355
    %2644 = vmatpush1.bf16.msra.mxu0 %v2354
    %2645 = vmatprep.subr.bf16.mxu0 %v2357
    %2646 = vmatpush1.bf16.msra.mxu0 %v2356
    %2647 = vmatprep.subr.bf16.mxu0 %v2359
    %2648 = vmatpush1.bf16.msra.mxu0 %v2358
    %2649 = vmatprep.subr.bf16.mxu0 %v2361
    %2650 = vmatpush1.bf16.msra.mxu0 %v2360
    %2651 = vmatprep.subr.bf16.mxu0 %v2363
    %2652 = vmatpush1.bf16.msra.mxu0 %v2362
    %2653 = vmatprep.subr.bf16.mxu0 %v2365
    %2654 = vmatpush1.bf16.msra.mxu0 %v2364
    %2655 = vmatprep.subr.bf16.mxu0 %v2367
    %2656 = vmatpush1.bf16.msra.mxu0 %v2366
    %2657 = vmatprep.subr.bf16.mxu0 %v2369
    %2658 = vmatpush1.bf16.msra.mxu0 %v2368
    %2659 = vmatprep.subr.bf16.mxu0 %v2371
    %2660 = vmatpush1.bf16.msra.mxu0 %v2370
    %2661 = vmatprep.subr.bf16.mxu0 %v2373
    %2662 = vmatpush1.bf16.msra.mxu0 %v2372
    %2663 = vmatprep.subr.bf16.mxu0 %v2375
    %2664 = vmatpush1.bf16.msra.mxu0 %v2374
    %2665 = vmatprep.subr.bf16.mxu0 %v2377
    %2666 = vmatpush1.bf16.msra.mxu0 %v2376
    %2667 = vmatprep.subr.bf16.mxu0 %v2379
    %2668 = vmatpush1.bf16.msra.mxu0 %v2378
    %2669 = vmatprep.subr.bf16.mxu0 %v2381
    %2670 = vmatpush1.bf16.msra.mxu0 %v2380
    %2671 = vmatprep.subr.bf16.mxu0 %v2383
    %2672 = vmatpush1.bf16.msra.mxu0 %v2382
    %2673 = vmatprep.mubr.bf16.mxu0 %v1743
    %2674 = vmatmul.mubr.bf16.gmra.mrb[0].mxu0 %v1742
    %v2675 = vpop.f32.mrb[0].mxu0
    %v2676 = vadd.f32 %v2633, %v2675
    %v2677 = vpop.f32.mrb[0].mxu0
    %v2678 = vadd.f32 %v2635, %v2677
    %v2679 = vpop.f32.mrb[0].mxu0
    %v2680 = vadd.f32 %v2637, %v2679
    %v2681 = vpop.f32.mrb[0].mxu0
    %v2682 = vadd.f32 %v2639, %v2681
    %2683 = vdwg.mxu0
    %v2684 = vld [vmem:[%s16] sm:$0x1]
    %v2686 = vlaneseq
    %v2687 = vshrl.u32 %v2686, 7
    %v2688 = vsub.s32 0, %v2687
    %v2689 = vrot.slane %v2684, %v2688
    %v2691 = vadd.f32 %v2676, %v2689
    %v2692 = vadd.f32 %v2680, %v2689
    %v2693 = vmax.f32 %v2691, 0.0
    %v2694 = vmax.f32 %v2692, 0.0
    %v2695 = vld [vmem:[%s17] sm:$0x1]
    %v2697 = vlaneseq
    %v2698 = vshrl.u32 %v2697, 7
    %v2699 = vsub.s32 0, %v2698
    %v2700 = vrot.slane %v2695, %v2699
    %v2702 = vmul.f32 %v2693, %v2700
    %v2703 = vmul.f32 %v2694, %v2700
    %2704 = vadd.xlane.f32.xlu0 %v2702
    %v2705 = vpop.xlane.xlu0 %2704
    %2706 = vadd.xlane.f32.xlu0 %v2703
    %v2707 = vpop.xlane.xlu0 %2706
    %s2708 = sld [smem:[#allocation2 + $0x8]]
    %v2709 = vstv %s2708
    %v2710 = vadd.f32 %v2705, %v2709
    %v2711 = vadd.f32 %v2707, %v2709
    %v2712 = vmax.f32 %v2710, %v2711
    %v2713 = vsub.f32 %v2710, %v2712
    %v2714 = vmul.f32 %v2713, 1.442695
    %v2715 = vpow.pop %v2714
    %v2716 = vsub.f32 %v2711, %v2712
    %v2717 = vmul.f32 %v2716, 1.442695
    %v2718 = vpow.pop %v2717
    %v2719 = vadd.f32 %v2715, %v2718
    %v2720 = vrcp.pop %v2719
    %v2721 = vmul.f32 %v2715, %v2720
    %v2722 = vmul.f32 %v2718, %v2720
    %v2723 = vmul.f32 %v2721, %v2678
    %v2724 = vmul.f32 %v2722, %v2682
    %v2725 = vadd.f32 %v2723, %v2724
    %v2726 = vld [vmem:[%s18] sm:$0x1]
    %v2728 = vlaneseq
    %v2729 = vshrl.u32 %v2728, 7
    %v2730 = vsub.s32 0, %v2729
    %v2731 = vrot.slane %v2726, %v2730
    %v2733 = vadd.f32 %v2725, %v2731
    %2734 = vst [vmem:[#allocation24] sm:$0xff] %v2733
    // Predicated region
    $region130: #{tpu_custom_call.1} parent=1 // pred_check
      _
    $region131: #{tpu_custom_call.1} parent=1 // pred_check_branch
      %2736 = sbr.rel (0) target = $region133
    $region132: #{tpu_custom_call.1} parent=1 // pred_region
      %s2738 = ssub.s32 128, 128
      %2739 = vsyncadd [#allocation4], %s2738
      %s2741 = sshll.u32 [#allocation24], 4
      %s2742 = int_to_ptr.vmem [resolvable:$true] %s2741
      %2744 = dma.vmem_to_hbm [thread:$0]  %s2742, 128, %s19, [#allocation4]
    $region133: #{tpu_custom_call.1} parent=1 // pred_fallthru
      _
    // Predicated region
    $region134: #{tpu_custom_call.1} parent=1 // pred_check
      _
    $region135: #{tpu_custom_call.1} parent=1 // pred_check_branch
      %2746 = sbr.rel (0) target = $region137
    $region136: #{tpu_custom_call.1} parent=1 // pred_region
      %2747 = dma.done [#allocation4], 128
    $region137: #{tpu_custom_call.1} parent=1 // pred_fallthru
      _
    %2748 = vsyncpa [#allocation3], 1
    %2749 = vsyncpa [#allocation8], 1
    %2750 = vsyncpa [#allocation11], 1
    %2751 = vsyncpa [#allocation14], 1
    %2752 = vsyncpa [#allocation17], 1
    %2753 = vsyncpa [#allocation20], 1
    %2754 = vsyncpa [#allocation23], 1
    %2755 = vsyncpa [#allocation4], 1
    %2756 = vsyncpa [#allocation5], 1

</llo_original>
